<compile_context>
chip_gen: v7x
topology: tpu7x:2x2x1
jax: 0.10.0
libtpu: 0.0.40
codegen_flags: <defaults>
</compile_context>

<pallas_src>
import functools
import math

import jax
import jax.numpy as jnp
from jax import lax
from jax.experimental import pallas as pl
from jax.experimental.pallas import tpu as pltpu

OUT_DIM_100 = {2: 47, 4: 43, 6: 39}
OUT_DIM_84 = {2: 39, 4: 35, 6: 31}


def _round_up(x, m):
    return (x + m - 1) // m * m


# ----------------------------------------------------------------------------
# Conv layer as a transposed, lane-dense GEMM:
#   out(F, M) = relu(Wt(F, K) @ patchesT(K, M) + b(F, 1))
# ----------------------------------------------------------------------------
def _conv_gemm_kernel(x_ref, w_ref, b_ref, o_ref):
    acc = jnp.dot(w_ref[...], x_ref[...], preferred_element_type=jnp.float32)
    acc = jnp.maximum(acc + b_ref[...], 0.0)     # bias + ReLU fused, f32
    o_ref[...] = acc.astype(o_ref.dtype)


def conv_gemm(patches_t, w_t, bias, *, tile_m=4096):
    """patches_t: (K, M) bf16, w_t: (F, K) bf16, bias: (F,) f32 -> (F, M) bf16."""
    k, m = patches_t.shape
    f, _ = w_t.shape
    tile_m = min(tile_m, _round_up(m, 128))      # lane-dense tile, ragged tail ok
    grid = (pl.cdiv(m, tile_m),)
    return pl.pallas_call(
        _conv_gemm_kernel,
        out_shape=jax.ShapeDtypeStruct((f, m), jnp.bfloat16),
        grid_spec=pltpu.PrefetchScalarGridSpec(
            num_scalar_prefetch=0,
            grid=grid,
            in_specs=[
                pl.BlockSpec((k, tile_m), lambda i: (0, i)),
                pl.BlockSpec((f, k), lambda i: (0, 0)),
                pl.BlockSpec((f, 1), lambda i: (0, 0)),
            ],
            out_specs=pl.BlockSpec((f, tile_m), lambda i: (0, i)),
        ),
        compiler_params=pltpu.CompilerParams(
            dimension_semantics=("parallel",),
        ),
    )(patches_t, w_t, bias.reshape(f, 1).astype(jnp.float32))


# ----------------------------------------------------------------------------
# Fused fc + LayerNorm + tanh, consuming the channel-major flatten directly.
#   h3: (F, B, S) bf16,  w3: (F, S, E) bf16  ->  out: (B, E) f32
# Grid = (batch tiles, filter groups); accumulate over filter groups in VMEM.
# ----------------------------------------------------------------------------
def _fc_ln_tanh_kernel(h_ref, w_ref, b_ref, g_ref, beta_ref, o_ref, acc_ref,
                       *, eps, kf):
    fi = pl.program_id(1)

    @pl.when(fi == 0)
    def _():
        acc_ref[...] = jnp.zeros_like(acc_ref)

    acc = acc_ref[...]
    for j in range(kf):                          # kf small static unrolled dots
        acc = acc + jnp.dot(h_ref[j], w_ref[j],
                            preferred_element_type=jnp.float32)
    acc_ref[...] = acc

    @pl.when(fi == pl.num_programs(1) - 1)
    def _():
        y = acc_ref[...] + b_ref[...]
        mean = jnp.mean(y, axis=-1, keepdims=True)
        cen = y - mean
        var = jnp.mean(cen * cen, axis=-1, keepdims=True)
        yn = cen * lax.rsqrt(var + eps)
        yn = yn * g_ref[...] + beta_ref[...]
        o_ref[...] = jnp.tanh(yn).astype(o_ref.dtype)


def fc_layernorm_tanh(h3, w3, b, gamma, beta, *, eps=1e-5, tile_b=256, kf=4):
    f, bsz, s = h3.shape
    _, _, e = w3.shape
    while f % kf:                                 # kf must divide num_filters
        kf -= 1
    tile_b = bsz if bsz <= tile_b else tile_b     # full dim (small B) or 256
    grid = (pl.cdiv(bsz, tile_b), f // kf)
    return pl.pallas_call(
        functools.partial(_fc_ln_tanh_kernel, eps=eps, kf=kf),
        out_shape=jax.ShapeDtypeStruct((bsz, e), jnp.float32),
        grid_spec=pltpu.PrefetchScalarGridSpec(
            num_scalar_prefetch=0,
            grid=grid,
            in_specs=[
                pl.BlockSpec((kf, tile_b, s), lambda bi, ki: (ki, bi, 0)),
                pl.BlockSpec((kf, s, e), lambda bi, ki: (ki, 0, 0)),
                pl.BlockSpec((1, e), lambda bi, ki: (0, 0)),
                pl.BlockSpec((1, e), lambda bi, ki: (0, 0)),
                pl.BlockSpec((1, e), lambda bi, ki: (0, 0)),
            ],
            out_specs=pl.BlockSpec((tile_b, e), lambda bi, ki: (bi, 0)),
            scratch_shapes=[pltpu.VMEM((tile_b, e), jnp.float32)],
        ),
        compiler_params=pltpu.CompilerParams(
            dimension_semantics=("parallel", "arbitrary"),
        ),
    )(h3, w3,
      b.reshape(1, e).astype(jnp.float32),
      gamma.reshape(1, e).astype(jnp.float32),
      beta.reshape(1, e).astype(jnp.float32))


# ----------------------------------------------------------------------------
# Transposed im2col on a channel-major activation (no HBM transposes).
#   x: (C, B, H, W)  ->  (K_pad, B*Ho*Wo),  k ordered ((dy, dx), c)
# ----------------------------------------------------------------------------
def _im2col_t(x, ksize, stride, k_pad=None):
    c, b, h, w = x.shape
    ho = (h - ksize) // stride + 1
    wo = (w - ksize) // stride + 1
    cols = []
    for dy in range(ksize):
        for dx in range(ksize):
            sl = lax.slice(
                x,
                (0, 0, dy, dx),
                (c, b, dy + stride * (ho - 1) + 1, dx + stride * (wo - 1) + 1),
                (1, 1, stride, stride),
            )
            cols.append(sl)                      # (C, B, Ho, Wo)
    k = ksize * ksize * c
    if k_pad is not None and k_pad > k:          # sublane-align K (free: built
        cols.append(jnp.zeros((k_pad - k, b, ho, wo), x.dtype))  # into concat)
        k = k_pad
    patches = jnp.concatenate(cols, axis=0)      # (K, B, Ho, Wo)
    return patches.reshape(k, b * ho * wo), ho, wo


# ----------------------------------------------------------------------------
# PixelEncoder module (JAX/Pallas port)
# ----------------------------------------------------------------------------
class PixelEncoder:
    """Convolutional encoder of pixel observations (JAX/Pallas)."""

    def __init__(self, obs_shape, feature_dim, num_layers=2, num_filters=32, *, key=None):
        assert len(obs_shape) == 3
        if key is None:
            key = jax.random.PRNGKey(0)
        self.obs_shape = obs_shape
        self.feature_dim = feature_dim
        self.num_layers = num_layers
        self.num_filters = num_filters
        if obs_shape[1] == 100:
            self.out_dim = OUT_DIM_100[num_layers]
        else:
            self.out_dim = OUT_DIM_84[num_layers]

        keys = jax.random.split(key, 2 * num_layers + 2)
        self.conv_w, self.conv_b = [], []
        chan = obs_shape[0]
        for i in range(num_layers):
            fan_in = chan * 9
            bound = 1.0 / math.sqrt(fan_in)
            self.conv_w.append(jax.random.uniform(
                keys[2 * i], (num_filters, chan, 3, 3), jnp.float32, -bound, bound))
            self.conv_b.append(jax.random.uniform(
                keys[2 * i + 1], (num_filters,), jnp.float32, -bound, bound))
            chan = num_filters

        fc_in = num_filters * self.out_dim * self.out_dim
        bound = 1.0 / math.sqrt(fc_in)
        self.fc_w = jax.random.uniform(keys[-2], (fc_in, feature_dim), jnp.float32, -bound, bound)
        self.fc_b = jax.random.uniform(keys[-1], (feature_dim,), jnp.float32, -bound, bound)
        self.ln_g = jnp.ones((feature_dim,), jnp.float32)
        self.ln_b = jnp.zeros((feature_dim,), jnp.float32)

    def _conv_gemm_weights(self):
        """Per-layer bf16 (F, K_pad) GEMM weights (k ordered ((dy,dx),c))."""
        out = []
        for i, w in enumerate(self.conv_w):
            f, c, kh, kw = w.shape
            if i == 0:
                w = w * (1.0 / 255.0)            # fold obs/255 into conv-1 weights
            w_t = jnp.transpose(w, (0, 2, 3, 1)).reshape(f, kh * kw * c)
            k = kh * kw * c
            k_pad = _round_up(k, 8)
            if k_pad > k:
                w_t = jnp.pad(w_t, ((0, 0), (0, k_pad - k)))
            out.append((w_t.astype(jnp.bfloat16), k_pad))
        return out

    def forward_conv(self, obs):
        b = obs.shape[0]
        # (B, C, H, W) -> channel-major (C, B, H, W), bf16 MXU operands.
        x = jnp.transpose(obs, (1, 0, 2, 3)).astype(jnp.bfloat16)
        ho = wo = None
        for i, (w_t, k_pad) in enumerate(self._conv_gemm_weights()):
            stride = 2 if i == 0 else 1
            patches_t, ho, wo = _im2col_t(x, 3, stride, k_pad=k_pad)
            y = conv_gemm(patches_t, w_t, self.conv_b[i])   # (F, B*Ho*Wo) bf16
            x = y.reshape(self.num_filters, b, ho, wo)
        # Channel-major flatten (F, B, Ho*Wo): the fc kernel consumes fc_w
        # reshaped to (F, Ho*Wo, E), so torch's NCHW flatten order is preserved
        # with zero activation transposes.
        return x.reshape(self.num_filters, b, ho * wo)

    def forward(self, obs, detach=False):
        h3 = self.forward_conv(obs)
        if detach:
            h3 = lax.stop_gradient(h3)
        s = h3.shape[-1]
        assert self.num_filters * s == self.fc_w.shape[0]
        w3 = self.fc_w.reshape(self.num_filters, s, self.feature_dim).astype(jnp.bfloat16)
        return fc_layernorm_tanh(h3, w3, self.fc_b, self.ln_g, self.ln_b)

    __call__ = forward

    def copy_conv_weights_from(self, source):
        """Tie convolutional layers (share the same arrays)."""
        for i in range(self.num_layers):
            self.conv_w[i] = source.conv_w[i]
            self.conv_b[i] = source.conv_b[i]


# ----------------------------------------------------------------------------
# Pure-JAX f32 reference (for correctness check)
# ----------------------------------------------------------------------------
def reference_forward(enc, obs):
    x = obs / 255.0
    for i in range(enc.num_layers):
        stride = 2 if i == 0 else 1
        x = lax.conv_general_dilated(
            x, enc.conv_w[i], window_strides=(stride, stride), padding="VALID",
            dimension_numbers=("NCHW", "OIHW", "NCHW"))
        x = jnp.maximum(x + enc.conv_b[i].reshape(1, -1, 1, 1), 0.0)
    h = x.reshape(x.shape[0], -1)
    y = h @ enc.fc_w + enc.fc_b
    mean = jnp.mean(y, axis=-1, keepdims=True)
    var = jnp.var(y, axis=-1, keepdims=True)
    yn = (y - mean) / jnp.sqrt(var + 1e-5)
    return jnp.tanh(yn * enc.ln_g + enc.ln_b)


if __name__ == "__main__":
    key = jax.random.PRNGKey(0)
    k_obs, k_params = jax.random.split(key)

    batch, channels, spatial = 2, 3, 84          # smallest spatial the module supports
    feature_dim, num_layers, num_filters = 50, 2, 32
    obs = jax.random.uniform(k_obs, (batch, channels, spatial, spatial),
                             jnp.float32, 0.0, 255.0)

    enc = PixelEncoder((channels, spatial, spatial), feature_dim,
                       num_layers=num_layers, num_filters=num_filters, key=k_params)

    out = jax.block_until_ready(enc(obs))
    ref = jax.block_until_ready(reference_forward(enc, obs))

    assert out.shape == (batch, feature_dim)
    assert out.dtype == jnp.float32
    assert bool(jnp.all(jnp.isfinite(out)))
    assert bool(jnp.all(jnp.abs(out) <= 1.0))
    max_err = float(jnp.max(jnp.abs(out - ref)))
    assert max_err < 5e-2, f"max abs err vs reference: {max_err}"

    print("KERNEL_OK")
</pallas_src>

<mosaic_0001>
module attributes {stable_mosaic.version = 11 : i64} {
  func.func @_conv_gemm_kernel(%arg0: i32, %arg1: memref<32x3456xbf16, #tpu.memory_space<vmem>>, %arg2: memref<32x32xbf16, #tpu.memory_space<vmem>>, %arg3: memref<32x1xf32, #tpu.memory_space<vmem>>, %arg4: memref<32x3456xbf16, #tpu.memory_space<vmem>>) attributes {dimension_semantics = [#tpu.dimension_semantics<parallel>], iteration_bounds = array<i64: 1>, scalar_prefetch = 0 : i64, scratch_operands = 0 : i64, tpu.core_type = #tpu.core_type<tc>, window_params = [{transform_indices = @transform_0, window_bounds = array<i64: 32, 3456>}, {pipeline_mode = #tpu.pipeline_mode<synchronous>, transform_indices = @transform_1, window_bounds = array<i64: 32, 32>}, {pipeline_mode = #tpu.pipeline_mode<synchronous>, transform_indices = @transform_2, window_bounds = array<i64: 32, 1>}, {transform_indices = @transform_3, window_bounds = array<i64: 32, 3456>}]} {
    %c0 = arith.constant 0 : index
    %c0_0 = arith.constant 0 : index
    %0 = vector.load %arg2[%c0, %c0_0] : memref<32x32xbf16, #tpu.memory_space<vmem>>, vector<32x32xbf16>
    %c0_1 = arith.constant 0 : index
    %c0_2 = arith.constant 0 : index
    %1 = vector.load %arg1[%c0_1, %c0_2] : memref<32x3456xbf16, #tpu.memory_space<vmem>>, vector<32x3456xbf16>
    %cst = arith.constant dense<0.000000e+00> : vector<32x3456xf32>
    %2 = tpu.matmul %0, %1, %cst {dimension_numbers = #tpu.dot_dimension_numbers<[1], [0], [0], [1], [0, 0, 1, 1], [], []>} : vector<32x32xbf16>, vector<32x3456xbf16>, vector<32x3456xf32> -> vector<32x3456xf32>
    %c0_3 = arith.constant 0 : index
    %c0_4 = arith.constant 0 : index
    %3 = vector.load %arg3[%c0_3, %c0_4] : memref<32x1xf32, #tpu.memory_space<vmem>>, vector<32x1xf32>
    %4 = vector.broadcast %3 : vector<32x1xf32> to vector<32x3456xf32>
    %5 = arith.addf %2, %4 : vector<32x3456xf32>
    %cst_5 = arith.constant 0.000000e+00 : f32
    %6 = vector.broadcast %cst_5 : f32 to vector<32x3456xf32>
    %7 = arith.maximumf %5, %6 : vector<32x3456xf32>
    %8 = arith.truncf %7 : vector<32x3456xf32> to vector<32x3456xbf16>
    %c0_6 = arith.constant 0 : index
    %c0_7 = arith.constant 0 : index
    %9 = vector.load %arg4[%c0_6, %c0_7] : memref<32x3456xbf16, #tpu.memory_space<vmem>>, vector<32x3456xbf16>
    tpu.vector_store %arg4[%c0_6, %c0_7], %8 {strides = array<i32>} : memref<32x3456xbf16, #tpu.memory_space<vmem>>, vector<32x3456xbf16>,
    return
  }
  func.func @transform_0(%arg0: i32) -> (i32, i32) {
    %c0_i32 = arith.constant 0 : i32
    %c0_i32_0 = arith.constant 0 : i32
    return %c0_i32, %arg0 : i32, i32
  }
  func.func @transform_1(%arg0: i32) -> (i32, i32) {
    %c0_i32 = arith.constant 0 : i32
    %c0_i32_0 = arith.constant 0 : i32
    %c0_i32_1 = arith.constant 0 : i32
    return %c0_i32, %c0_i32_0 : i32, i32
  }
  func.func @transform_2(%arg0: i32) -> (i32, i32) {
    %c0_i32 = arith.constant 0 : i32
    %c0_i32_0 = arith.constant 0 : i32
    %c0_i32_1 = arith.constant 0 : i32
    return %c0_i32, %c0_i32_0 : i32, i32
  }
  func.func @transform_3(%arg0: i32) -> (i32, i32) {
    %c0_i32 = arith.constant 0 : i32
    %c0_i32_0 = arith.constant 0 : i32
    return %c0_i32, %arg0 : i32, i32
  }
}

</mosaic_0001>

<llo_original>
// kernel: tpu_custom_call.1
$region0: #{tpu_custom_call.1}
  #allocation0 [shape = 'u32[]', space=smem, size = 0x4, offset = 0x4, fixed_abs, tag = 'smem constant byte address 0x4 - core index']
  #allocation1 [shape = 'u32[144,128]{1,0:T(1,128)}', space=vmem, size = 0x12000, scoped, tag = 'internal scratch']
  %s0 = inlined_call_operand.hbm [shape: bf16[32,3362], index: 0, kind: input, shape index: {}]
  %s1 = inlined_call_operand.vmem [shape: bf16[32,32], index: 1, kind: input, shape index: {}]
  %s2 = inlined_call_operand.vmem [shape: f32[32,1], index: 2, kind: input, shape index: {}]
  %s3 = inlined_call_operand.hbm [shape: bf16[32,3362], index: 3, kind: output, shape index: {}]
  %s4 = sld [smem:[#allocation0]]
  $region26: #{tpu_custom_call.1} parent=0
    _
  %s6 = ssub.s32 1, %s4
  %s7 = scalar_select 0, %s6, %s4
  $region1: #{tpu_custom_call.1} parent=0
    #allocation2 [shape = 'u8[221184]{0}', space=vmem, size = 0x36000, scoped, tag = 'input window, operand 0, single buffered']
    #allocation3 [shape = 's32[1]{0}', space=sflag, size = 0x4, scoped, tag = 'scoped memory for tpu_custom_call.1']
    #allocation4 [shape = 's32[1]{0}', space=sflag, size = 0x4, scoped, tag = 'scoped memory for tpu_custom_call.1']
    #allocation5 [shape = 'u8[221184]{0}', space=vmem, size = 0x36000, scoped, tag = 'output window, operand 0, single buffered']
    %8 = vsyncpa [#allocation3], 0
    %9 = vsyncpa [#allocation4], 0
    // Predicated region
    $region2: #{tpu_custom_call.1} parent=1 // pred_check
      _
    $region3: #{tpu_custom_call.1} parent=1 // pred_check_branch
      %11 = sbr.rel (0) target = $region5
    $region4: #{tpu_custom_call.1} parent=1 // pred_region
      %s13 = ssub.s32 6912, 6912
      %14 = vsyncadd [#allocation3], %s13
      %s15 = sshll.u32 [#allocation2], 4
      %s16 = int_to_ptr.vmem [resolvable:$true] %s15
      %21 = dma.hbm_to_vmem [thread:$0]  %s0, 6912, %s16, [#allocation3], 1728, 1728, 108
    $region5: #{tpu_custom_call.1} parent=1 // pred_fallthru
      _
    // Predicated region
    $region6: #{tpu_custom_call.1} parent=1 // pred_check
      _
    $region7: #{tpu_custom_call.1} parent=1 // pred_check_branch
      %23 = sbr.rel (0) target = $region9
    $region8: #{tpu_custom_call.1} parent=1 // pred_region
      _
    $region9: #{tpu_custom_call.1} parent=1 // pred_fallthru
      _
    // Predicated region
    $region10: #{tpu_custom_call.1} parent=1 // pred_check
      _
    $region11: #{tpu_custom_call.1} parent=1 // pred_check_branch
      %25 = sbr.rel (0) target = $region13
    $region12: #{tpu_custom_call.1} parent=1 // pred_region
      _
    $region13: #{tpu_custom_call.1} parent=1 // pred_fallthru
      _
    // Predicated region
    $region14: #{tpu_custom_call.1} parent=1 // pred_check
      _
    $region15: #{tpu_custom_call.1} parent=1 // pred_check_branch
      %27 = sbr.rel (0) target = $region17
    $region16: #{tpu_custom_call.1} parent=1 // pred_region
      %28 = dma.done [#allocation3], 6912
    $region17: #{tpu_custom_call.1} parent=1 // pred_fallthru
      _
    %v30 = vld [vmem:[%s1] sm:$0xf]
    %v31 = vld [vmem:[%s1 + $0x4] sm:$0xf]
    %v32 = vld [vmem:[%s1 + $0x8] sm:$0xf]
    %v33 = vld [vmem:[%s1 + $0xc] sm:$0xf]
    %v34 = vld [vmem:[#allocation2] sm:$0xff]
    %v35 = vld [vmem:[#allocation2 + $0x8] sm:$0xff]
    %v36 = vld [vmem:[#allocation2 + $0x10] sm:$0xff]
    %v37 = vld [vmem:[#allocation2 + $0x18] sm:$0xff]
    %v38 = vld [vmem:[#allocation2 + $0x20] sm:$0xff]
    %v39 = vld [vmem:[#allocation2 + $0x28] sm:$0xff]
    %v40 = vld [vmem:[#allocation2 + $0x30] sm:$0xff]
    %v41 = vld [vmem:[#allocation2 + $0x38] sm:$0xff]
    %v42 = vld [vmem:[#allocation2 + $0x40] sm:$0xff]
    %v43 = vld [vmem:[#allocation2 + $0x48] sm:$0xff]
    %v44 = vld [vmem:[#allocation2 + $0x50] sm:$0xff]
    %v45 = vld [vmem:[#allocation2 + $0x58] sm:$0xff]
    %v46 = vld [vmem:[#allocation2 + $0x60] sm:$0xff]
    %v47 = vld [vmem:[#allocation2 + $0x68] sm:$0xf]
    %v48 = vld [vmem:[#allocation2 + $0x6c] sm:$0xff]
    %v49 = vld [vmem:[#allocation2 + $0x74] sm:$0xff]
    %v50 = vld [vmem:[#allocation2 + $0x7c] sm:$0xff]
    %v51 = vld [vmem:[#allocation2 + $0x84] sm:$0xff]
    %v52 = vld [vmem:[#allocation2 + $0x8c] sm:$0xff]
    %v53 = vld [vmem:[#allocation2 + $0x94] sm:$0xff]
    %v54 = vld [vmem:[#allocation2 + $0x9c] sm:$0xff]
    %v55 = vld [vmem:[#allocation2 + $0xa4] sm:$0xff]
    %v56 = vld [vmem:[#allocation2 + $0xac] sm:$0xff]
    %v57 = vld [vmem:[#allocation2 + $0xb4] sm:$0xff]
    %v58 = vld [vmem:[#allocation2 + $0xbc] sm:$0xff]
    %v59 = vld [vmem:[#allocation2 + $0xc4] sm:$0xff]
    %v60 = vld [vmem:[#allocation2 + $0xcc] sm:$0xff]
    %v61 = vld [vmem:[#allocation2 + $0xd4] sm:$0xf]
    %v62 = vld [vmem:[#allocation2 + $0xd8] sm:$0xff]
    %v63 = vld [vmem:[#allocation2 + $0xe0] sm:$0xff]
    %v64 = vld [vmem:[#allocation2 + $0xe8] sm:$0xff]
    %v65 = vld [vmem:[#allocation2 + $0xf0] sm:$0xff]
    %v66 = vld [vmem:[#allocation2 + $0xf8] sm:$0xff]
    %v67 = vld [vmem:[#allocation2 + $0x100] sm:$0xff]
    %v68 = vld [vmem:[#allocation2 + $0x108] sm:$0xff]
    %v69 = vld [vmem:[#allocation2 + $0x110] sm:$0xff]
    %v70 = vld [vmem:[#allocation2 + $0x118] sm:$0xff]
    %v71 = vld [vmem:[#allocation2 + $0x120] sm:$0xff]
    %v72 = vld [vmem:[#allocation2 + $0x128] sm:$0xff]
    %v73 = vld [vmem:[#allocation2 + $0x130] sm:$0xff]
    %v74 = vld [vmem:[#allocation2 + $0x138] sm:$0xff]
    %v75 = vld [vmem:[#allocation2 + $0x140] sm:$0xf]
    %v76 = vld [vmem:[#allocation2 + $0x144] sm:$0xff]
    %v77 = vld [vmem:[#allocation2 + $0x14c] sm:$0xff]
    %v78 = vld [vmem:[#allocation2 + $0x154] sm:$0xff]
    %v79 = vld [vmem:[#allocation2 + $0x15c] sm:$0xff]
    %v80 = vld [vmem:[#allocation2 + $0x164] sm:$0xff]
    %v81 = vld [vmem:[#allocation2 + $0x16c] sm:$0xff]
    %v82 = vld [vmem:[#allocation2 + $0x174] sm:$0xff]
    %v83 = vld [vmem:[#allocation2 + $0x17c] sm:$0xff]
    %v84 = vld [vmem:[#allocation2 + $0x184] sm:$0xff]
    %v85 = vld [vmem:[#allocation2 + $0x18c] sm:$0xff]
    %v86 = vld [vmem:[#allocation2 + $0x194] sm:$0xff]
    %v87 = vld [vmem:[#allocation2 + $0x19c] sm:$0xff]
    %v88 = vld [vmem:[#allocation2 + $0x1a4] sm:$0xff]
    %v89 = vld [vmem:[#allocation2 + $0x1ac] sm:$0xf]
    %v90 = vld [vmem:[%s2] sm:$0xff]
    %v91 = vld [vmem:[%s2 + $0x8] sm:$0xff]
    %v92 = vld [vmem:[%s2 + $0x10] sm:$0xff]
    %v93 = vld [vmem:[%s2 + $0x18] sm:$0xff]
    %95 = vset.pattern.permute.xlu0 0
    %96 = vperm.xlu0 %95, %v90
    %v97 = vpop.permute.xlu0 %96
    %100 = vset.pattern.permute.xlu0 0
    %101 = vperm.xlu0 %100, %v91
    %v102 = vpop.permute.xlu0 %101
    %105 = vset.pattern.permute.xlu0 0
    %106 = vperm.xlu0 %105, %v92
    %v107 = vpop.permute.xlu0 %106
    %110 = vset.pattern.permute.xlu0 0
    %111 = vperm.xlu0 %110, %v93
    %v112 = vpop.permute.xlu0 %111
    %v118 = vunpack.c.l.b16 %v30
    %v119 = vunpack.c.l.b16 %v31
    %v120 = vunpack.c.l.b16 %v32
    %v121 = vunpack.c.l.b16 %v33
    %v122 = vpack.c.b16 %v119, %v118
    %v123 = vpack.c.b16 %v121, %v120
    %v180 = vunpack.c.l.b16 %v34
    %v181 = vunpack.c.h.b16 %v34
    %v182 = vunpack.c.l.b16 %v35
    %v183 = vunpack.c.h.b16 %v35
    %v184 = vunpack.c.l.b16 %v36
    %v185 = vunpack.c.h.b16 %v36
    %v186 = vunpack.c.l.b16 %v37
    %v187 = vunpack.c.h.b16 %v37
    %v188 = vunpack.c.l.b16 %v38
    %v189 = vunpack.c.h.b16 %v38
    %v190 = vunpack.c.l.b16 %v39
    %v191 = vunpack.c.h.b16 %v39
    %v192 = vunpack.c.l.b16 %v40
    %v193 = vunpack.c.h.b16 %v40
    %v194 = vunpack.c.l.b16 %v41
    %v195 = vunpack.c.h.b16 %v41
    %v196 = vunpack.c.l.b16 %v42
    %v197 = vunpack.c.h.b16 %v42
    %v198 = vunpack.c.l.b16 %v43
    %v199 = vunpack.c.h.b16 %v43
    %v200 = vunpack.c.l.b16 %v44
    %v201 = vunpack.c.h.b16 %v44
    %v202 = vunpack.c.l.b16 %v45
    %v203 = vunpack.c.h.b16 %v45
    %v204 = vunpack.c.l.b16 %v46
    %v205 = vunpack.c.h.b16 %v46
    %v206 = vunpack.c.l.b16 %v47
    %v207 = vunpack.c.l.b16 %v48
    %v208 = vunpack.c.h.b16 %v48
    %v209 = vunpack.c.l.b16 %v49
    %v210 = vunpack.c.h.b16 %v49
    %v211 = vunpack.c.l.b16 %v50
    %v212 = vunpack.c.h.b16 %v50
    %v213 = vunpack.c.l.b16 %v51
    %v214 = vunpack.c.h.b16 %v51
    %v215 = vunpack.c.l.b16 %v52
    %v216 = vunpack.c.h.b16 %v52
    %v217 = vunpack.c.l.b16 %v53
    %v218 = vunpack.c.h.b16 %v53
    %v219 = vunpack.c.l.b16 %v54
    %v220 = vunpack.c.h.b16 %v54
    %v221 = vunpack.c.l.b16 %v55
    %v222 = vunpack.c.h.b16 %v55
    %v223 = vunpack.c.l.b16 %v56
    %v224 = vunpack.c.h.b16 %v56
    %v225 = vunpack.c.l.b16 %v57
    %v226 = vunpack.c.h.b16 %v57
    %v227 = vunpack.c.l.b16 %v58
    %v228 = vunpack.c.h.b16 %v58
    %v229 = vunpack.c.l.b16 %v59
    %v230 = vunpack.c.h.b16 %v59
    %v231 = vunpack.c.l.b16 %v60
    %v232 = vunpack.c.h.b16 %v60
    %v233 = vunpack.c.l.b16 %v61
    %v234 = vunpack.c.l.b16 %v62
    %v235 = vunpack.c.h.b16 %v62
    %v236 = vunpack.c.l.b16 %v63
    %v237 = vunpack.c.h.b16 %v63
    %v238 = vunpack.c.l.b16 %v64
    %v239 = vunpack.c.h.b16 %v64
    %v240 = vunpack.c.l.b16 %v65
    %v241 = vunpack.c.h.b16 %v65
    %v242 = vunpack.c.l.b16 %v66
    %v243 = vunpack.c.h.b16 %v66
    %v244 = vunpack.c.l.b16 %v67
    %v245 = vunpack.c.h.b16 %v67
    %v246 = vunpack.c.l.b16 %v68
    %v247 = vunpack.c.h.b16 %v68
    %v248 = vunpack.c.l.b16 %v69
    %v249 = vunpack.c.h.b16 %v69
    %v250 = vunpack.c.l.b16 %v70
    %v251 = vunpack.c.h.b16 %v70
    %v252 = vunpack.c.l.b16 %v71
    %v253 = vunpack.c.h.b16 %v71
    %v254 = vunpack.c.l.b16 %v72
    %v255 = vunpack.c.h.b16 %v72
    %v256 = vunpack.c.l.b16 %v73
    %v257 = vunpack.c.h.b16 %v73
    %v258 = vunpack.c.l.b16 %v74
    %v259 = vunpack.c.h.b16 %v74
    %v260 = vunpack.c.l.b16 %v75
    %v261 = vunpack.c.l.b16 %v76
    %v262 = vunpack.c.h.b16 %v76
    %v263 = vunpack.c.l.b16 %v77
    %v264 = vunpack.c.h.b16 %v77
    %v265 = vunpack.c.l.b16 %v78
    %v266 = vunpack.c.h.b16 %v78
    %v267 = vunpack.c.l.b16 %v79
    %v268 = vunpack.c.h.b16 %v79
    %v269 = vunpack.c.l.b16 %v80
    %v270 = vunpack.c.h.b16 %v80
    %v271 = vunpack.c.l.b16 %v81
    %v272 = vunpack.c.h.b16 %v81
    %v273 = vunpack.c.l.b16 %v82
    %v274 = vunpack.c.h.b16 %v82
    %v275 = vunpack.c.l.b16 %v83
    %v276 = vunpack.c.h.b16 %v83
    %v277 = vunpack.c.l.b16 %v84
    %v278 = vunpack.c.h.b16 %v84
    %v279 = vunpack.c.l.b16 %v85
    %v280 = vunpack.c.h.b16 %v85
    %v281 = vunpack.c.l.b16 %v86
    %v282 = vunpack.c.h.b16 %v86
    %v283 = vunpack.c.l.b16 %v87
    %v284 = vunpack.c.h.b16 %v87
    %v285 = vunpack.c.l.b16 %v88
    %v286 = vunpack.c.h.b16 %v88
    %v287 = vunpack.c.l.b16 %v89
    %v288 = vpack.c.b16 %v207, %v180
    %v289 = vpack.c.b16 %v208, %v181
    %v290 = vpack.c.b16 %v209, %v182
    %v291 = vpack.c.b16 %v210, %v183
    %v292 = vpack.c.b16 %v211, %v184
    %v293 = vpack.c.b16 %v212, %v185
    %v294 = vpack.c.b16 %v213, %v186
    %v295 = vpack.c.b16 %v214, %v187
    %v296 = vpack.c.b16 %v215, %v188
    %v297 = vpack.c.b16 %v216, %v189
    %v298 = vpack.c.b16 %v217, %v190
    %v299 = vpack.c.b16 %v218, %v191
    %v300 = vpack.c.b16 %v219, %v192
    %v301 = vpack.c.b16 %v220, %v193
    %v302 = vpack.c.b16 %v221, %v194
    %v303 = vpack.c.b16 %v222, %v195
    %v304 = vpack.c.b16 %v223, %v196
    %v305 = vpack.c.b16 %v224, %v197
    %v306 = vpack.c.b16 %v225, %v198
    %v307 = vpack.c.b16 %v226, %v199
    %v308 = vpack.c.b16 %v227, %v200
    %v309 = vpack.c.b16 %v228, %v201
    %v310 = vpack.c.b16 %v229, %v202
    %v311 = vpack.c.b16 %v230, %v203
    %v312 = vpack.c.b16 %v231, %v204
    %v313 = vpack.c.b16 %v232, %v205
    %v314 = vpack.c.b16 %v233, %v206
    %v315 = vpack.c.b16 %v261, %v234
    %v316 = vpack.c.b16 %v262, %v235
    %v317 = vpack.c.b16 %v263, %v236
    %v318 = vpack.c.b16 %v264, %v237
    %v319 = vpack.c.b16 %v265, %v238
    %v320 = vpack.c.b16 %v266, %v239
    %v321 = vpack.c.b16 %v267, %v240
    %v322 = vpack.c.b16 %v268, %v241
    %v323 = vpack.c.b16 %v269, %v242
    %v324 = vpack.c.b16 %v270, %v243
    %v325 = vpack.c.b16 %v271, %v244
    %v326 = vpack.c.b16 %v272, %v245
    %v327 = vpack.c.b16 %v273, %v246
    %v328 = vpack.c.b16 %v274, %v247
    %v329 = vpack.c.b16 %v275, %v248
    %v330 = vpack.c.b16 %v276, %v249
    %v331 = vpack.c.b16 %v277, %v250
    %v332 = vpack.c.b16 %v278, %v251
    %v333 = vpack.c.b16 %v279, %v252
    %v334 = vpack.c.b16 %v280, %v253
    %v335 = vpack.c.b16 %v281, %v254
    %v336 = vpack.c.b16 %v282, %v255
    %v337 = vpack.c.b16 %v283, %v256
    %v338 = vpack.c.b16 %v284, %v257
    %v339 = vpack.c.b16 %v285, %v258
    %v340 = vpack.c.b16 %v286, %v259
    %v341 = vpack.c.b16 %v287, %v260
    %vm396 = vcmask 261120
    %v398 = vsel %vm396, %v122, 0
    %v401 = vsel %vm396, %v123, 0
    %403 = vmatprep.subr.bf16.mxu0 %v289
    %404 = vmatpush1.bf16.msra.mxu0 %v288
    %405 = vmatprep.subr.bf16.mxu0 %v316
    %406 = vmatpush1.bf16.msra.mxu0 %v315
    %407 = vmatprep.subr.bf16.mxu0 0
    %408 = vmatpush1.bf16.msra.mxu0 0
    %409 = vmatprep.subr.bf16.mxu0 0
    %410 = vmatpush1.bf16.msra.mxu0 0
    %411 = vmatprep.subr.bf16.mxu0 0
    %412 = vmatpush1.bf16.msra.mxu0 0
    %413 = vmatprep.subr.bf16.mxu0 0
    %414 = vmatpush1.bf16.msra.mxu0 0
    %415 = vmatprep.subr.bf16.mxu0 0
    %416 = vmatpush1.bf16.msra.mxu0 0
    %417 = vmatprep.subr.bf16.mxu0 0
    %418 = vmatpush1.bf16.msra.mxu0 0
    %419 = vmatprep.subr.bf16.mxu0 0
    %420 = vmatpush1.bf16.msra.mxu0 0
    %421 = vmatprep.subr.bf16.mxu0 0
    %422 = vmatpush1.bf16.msra.mxu0 0
    %423 = vmatprep.subr.bf16.mxu0 0
    %424 = vmatpush1.bf16.msra.mxu0 0
    %425 = vmatprep.subr.bf16.mxu0 0
    %426 = vmatpush1.bf16.msra.mxu0 0
    %427 = vmatprep.subr.bf16.mxu0 0
    %428 = vmatpush1.bf16.msra.mxu0 0
    %429 = vmatprep.subr.bf16.mxu0 0
    %430 = vmatpush1.bf16.msra.mxu0 0
    %431 = vmatprep.subr.bf16.mxu0 0
    %432 = vmatpush1.bf16.msra.mxu0 0
    %433 = vmatprep.subr.bf16.mxu0 0
    %434 = vmatpush1.bf16.msra.mxu0 0
    %435 = vmatprep.mubr.bf16.mxu0 0
    %436 = vmatmul.mubr.bf16.gmra.mrb[0].mxu0 %v398
    %v437 = vpop.f32.mrb[0].mxu0
    %v438 = vadd.f32 %v97, %v437
    %v439 = vpop.f32.mrb[0].mxu0
    %v440 = vadd.f32 %v97, %v439
    %v441 = vpop.f32.mrb[0].mxu0
    %v442 = vadd.f32 %v102, %v441
    %v443 = vpop.f32.mrb[0].mxu0
    %v444 = vadd.f32 %v102, %v443
    %445 = vmatprep.mubr.bf16.mxu0 0
    %446 = vmatmul.mubr.bf16.gmra.mrb[0].mxu0 %v401
    %v447 = vpop.f32.mrb[0].mxu0
    %v448 = vadd.f32 %v107, %v447
    %v449 = vpop.f32.mrb[0].mxu0
    %v450 = vadd.f32 %v107, %v449
    %v451 = vpop.f32.mrb[0].mxu0
    %v452 = vadd.f32 %v112, %v451
    %v453 = vpop.f32.mrb[0].mxu0
    %v454 = vadd.f32 %v112, %v453
    %455 = vdwg.mxu0
    %456 = vmatprep.subr.bf16.mxu0 %v291
    %457 = vmatpush1.bf16.msra.mxu0 %v290
    %458 = vmatprep.subr.bf16.mxu0 %v318
    %459 = vmatpush1.bf16.msra.mxu0 %v317
    %460 = vmatprep.subr.bf16.mxu0 0
    %461 = vmatpush1.bf16.msra.mxu0 0
    %462 = vmatprep.subr.bf16.mxu0 0
    %463 = vmatpush1.bf16.msra.mxu0 0
    %464 = vmatprep.subr.bf16.mxu0 0
    %465 = vmatpush1.bf16.msra.mxu0 0
    %466 = vmatprep.subr.bf16.mxu0 0
    %467 = vmatpush1.bf16.msra.mxu0 0
    %468 = vmatprep.subr.bf16.mxu0 0
    %469 = vmatpush1.bf16.msra.mxu0 0
    %470 = vmatprep.subr.bf16.mxu0 0
    %471 = vmatpush1.bf16.msra.mxu0 0
    %472 = vmatprep.subr.bf16.mxu0 0
    %473 = vmatpush1.bf16.msra.mxu0 0
    %474 = vmatprep.subr.bf16.mxu0 0
    %475 = vmatpush1.bf16.msra.mxu0 0
    %476 = vmatprep.subr.bf16.mxu0 0
    %477 = vmatpush1.bf16.msra.mxu0 0
    %478 = vmatprep.subr.bf16.mxu0 0
    %479 = vmatpush1.bf16.msra.mxu0 0
    %480 = vmatprep.subr.bf16.mxu0 0
    %481 = vmatpush1.bf16.msra.mxu0 0
    %482 = vmatprep.subr.bf16.mxu0 0
    %483 = vmatpush1.bf16.msra.mxu0 0
    %484 = vmatprep.subr.bf16.mxu0 0
    %485 = vmatpush1.bf16.msra.mxu0 0
    %486 = vmatprep.subr.bf16.mxu0 0
    %487 = vmatpush1.bf16.msra.mxu0 0
    %488 = vmatprep.mubr.bf16.mxu0 0
    %489 = vmatmul.mubr.bf16.gmra.mrb[0].mxu0 %v398
    %v490 = vpop.f32.mrb[0].mxu0
    %v491 = vadd.f32 %v97, %v490
    %v492 = vpop.f32.mrb[0].mxu0
    %v493 = vadd.f32 %v97, %v492
    %v494 = vpop.f32.mrb[0].mxu0
    %v495 = vadd.f32 %v102, %v494
    %v496 = vpop.f32.mrb[0].mxu0
    %v497 = vadd.f32 %v102, %v496
    %498 = vmatprep.mubr.bf16.mxu0 0
    %499 = vmatmul.mubr.bf16.gmra.mrb[0].mxu0 %v401
    %v500 = vpop.f32.mrb[0].mxu0
    %v501 = vadd.f32 %v107, %v500
    %v502 = vpop.f32.mrb[0].mxu0
    %v503 = vadd.f32 %v107, %v502
    %v504 = vpop.f32.mrb[0].mxu0
    %v505 = vadd.f32 %v112, %v504
    %v506 = vpop.f32.mrb[0].mxu0
    %v507 = vadd.f32 %v112, %v506
    %508 = vdwg.mxu0
    %509 = vmatprep.subr.bf16.mxu0 %v293
    %510 = vmatpush1.bf16.msra.mxu0 %v292
    %511 = vmatprep.subr.bf16.mxu0 %v320
    %512 = vmatpush1.bf16.msra.mxu0 %v319
    %513 = vmatprep.subr.bf16.mxu0 0
    %514 = vmatpush1.bf16.msra.mxu0 0
    %515 = vmatprep.subr.bf16.mxu0 0
    %516 = vmatpush1.bf16.msra.mxu0 0
    %517 = vmatprep.subr.bf16.mxu0 0
    %518 = vmatpush1.bf16.msra.mxu0 0
    %519 = vmatprep.subr.bf16.mxu0 0
    %520 = vmatpush1.bf16.msra.mxu0 0
    %521 = vmatprep.subr.bf16.mxu0 0
    %522 = vmatpush1.bf16.msra.mxu0 0
    %523 = vmatprep.subr.bf16.mxu0 0
    %524 = vmatpush1.bf16.msra.mxu0 0
    %525 = vmatprep.subr.bf16.mxu0 0
    %526 = vmatpush1.bf16.msra.mxu0 0
    %527 = vmatprep.subr.bf16.mxu0 0
    %528 = vmatpush1.bf16.msra.mxu0 0
    %529 = vmatprep.subr.bf16.mxu0 0
    %530 = vmatpush1.bf16.msra.mxu0 0
    %531 = vmatprep.subr.bf16.mxu0 0
    %532 = vmatpush1.bf16.msra.mxu0 0
    %533 = vmatprep.subr.bf16.mxu0 0
    %534 = vmatpush1.bf16.msra.mxu0 0
    %535 = vmatprep.subr.bf16.mxu0 0
    %536 = vmatpush1.bf16.msra.mxu0 0
    %537 = vmatprep.subr.bf16.mxu0 0
    %538 = vmatpush1.bf16.msra.mxu0 0
    %539 = vmatprep.subr.bf16.mxu0 0
    %540 = vmatpush1.bf16.msra.mxu0 0
    %541 = vmatprep.mubr.bf16.mxu0 0
    %542 = vmatmul.mubr.bf16.gmra.mrb[0].mxu0 %v398
    %v543 = vpop.f32.mrb[0].mxu0
    %v544 = vadd.f32 %v97, %v543
    %v545 = vpop.f32.mrb[0].mxu0
    %v546 = vadd.f32 %v97, %v545
    %v547 = vpop.f32.mrb[0].mxu0
    %v548 = vadd.f32 %v102, %v547
    %v549 = vpop.f32.mrb[0].mxu0
    %v550 = vadd.f32 %v102, %v549
    %551 = vmatprep.mubr.bf16.mxu0 0
    %552 = vmatmul.mubr.bf16.gmra.mrb[0].mxu0 %v401
    %v553 = vpop.f32.mrb[0].mxu0
    %v554 = vadd.f32 %v107, %v553
    %v555 = vpop.f32.mrb[0].mxu0
    %v556 = vadd.f32 %v107, %v555
    %v557 = vpop.f32.mrb[0].mxu0
    %v558 = vadd.f32 %v112, %v557
    %v559 = vpop.f32.mrb[0].mxu0
    %v560 = vadd.f32 %v112, %v559
    %561 = vdwg.mxu0
    %562 = vmatprep.subr.bf16.mxu0 %v295
    %563 = vmatpush1.bf16.msra.mxu0 %v294
    %564 = vmatprep.subr.bf16.mxu0 %v322
    %565 = vmatpush1.bf16.msra.mxu0 %v321
    %566 = vmatprep.subr.bf16.mxu0 0
    %567 = vmatpush1.bf16.msra.mxu0 0
    %568 = vmatprep.subr.bf16.mxu0 0
    %569 = vmatpush1.bf16.msra.mxu0 0
    %570 = vmatprep.subr.bf16.mxu0 0
    %571 = vmatpush1.bf16.msra.mxu0 0
    %572 = vmatprep.subr.bf16.mxu0 0
    %573 = vmatpush1.bf16.msra.mxu0 0
    %574 = vmatprep.subr.bf16.mxu0 0
    %575 = vmatpush1.bf16.msra.mxu0 0
    %576 = vmatprep.subr.bf16.mxu0 0
    %577 = vmatpush1.bf16.msra.mxu0 0
    %578 = vmatprep.subr.bf16.mxu0 0
    %579 = vmatpush1.bf16.msra.mxu0 0
    %580 = vmatprep.subr.bf16.mxu0 0
    %581 = vmatpush1.bf16.msra.mxu0 0
    %582 = vmatprep.subr.bf16.mxu0 0
    %583 = vmatpush1.bf16.msra.mxu0 0
    %584 = vmatprep.subr.bf16.mxu0 0
    %585 = vmatpush1.bf16.msra.mxu0 0
    %586 = vmatprep.subr.bf16.mxu0 0
    %587 = vmatpush1.bf16.msra.mxu0 0
    %588 = vmatprep.subr.bf16.mxu0 0
    %589 = vmatpush1.bf16.msra.mxu0 0
    %590 = vmatprep.subr.bf16.mxu0 0
    %591 = vmatpush1.bf16.msra.mxu0 0
    %592 = vmatprep.subr.bf16.mxu0 0
    %593 = vmatpush1.bf16.msra.mxu0 0
    %594 = vmatprep.mubr.bf16.mxu0 0
    %595 = vmatmul.mubr.bf16.gmra.mrb[0].mxu0 %v398
    %v596 = vpop.f32.mrb[0].mxu0
    %v597 = vadd.f32 %v97, %v596
    %v598 = vpop.f32.mrb[0].mxu0
    %v599 = vadd.f32 %v97, %v598
    %v600 = vpop.f32.mrb[0].mxu0
    %v601 = vadd.f32 %v102, %v600
    %v602 = vpop.f32.mrb[0].mxu0
    %v603 = vadd.f32 %v102, %v602
    %604 = vmatprep.mubr.bf16.mxu0 0
    %605 = vmatmul.mubr.bf16.gmra.mrb[0].mxu0 %v401
    %v606 = vpop.f32.mrb[0].mxu0
    %v607 = vadd.f32 %v107, %v606
    %v608 = vpop.f32.mrb[0].mxu0
    %v609 = vadd.f32 %v107, %v608
    %v610 = vpop.f32.mrb[0].mxu0
    %v611 = vadd.f32 %v112, %v610
    %v612 = vpop.f32.mrb[0].mxu0
    %v613 = vadd.f32 %v112, %v612
    %614 = vdwg.mxu0
    %615 = vmatprep.subr.bf16.mxu0 %v297
    %616 = vmatpush1.bf16.msra.mxu0 %v296
    %617 = vmatprep.subr.bf16.mxu0 %v324
    %618 = vmatpush1.bf16.msra.mxu0 %v323
    %619 = vmatprep.subr.bf16.mxu0 0
    %620 = vmatpush1.bf16.msra.mxu0 0
    %621 = vmatprep.subr.bf16.mxu0 0
    %622 = vmatpush1.bf16.msra.mxu0 0
    %623 = vmatprep.subr.bf16.mxu0 0
    %624 = vmatpush1.bf16.msra.mxu0 0
    %625 = vmatprep.subr.bf16.mxu0 0
    %626 = vmatpush1.bf16.msra.mxu0 0
    %627 = vmatprep.subr.bf16.mxu0 0
    %628 = vmatpush1.bf16.msra.mxu0 0
    %629 = vmatprep.subr.bf16.mxu0 0
    %630 = vmatpush1.bf16.msra.mxu0 0
    %631 = vmatprep.subr.bf16.mxu0 0
    %632 = vmatpush1.bf16.msra.mxu0 0
    %633 = vmatprep.subr.bf16.mxu0 0
    %634 = vmatpush1.bf16.msra.mxu0 0
    %635 = vmatprep.subr.bf16.mxu0 0
    %636 = vmatpush1.bf16.msra.mxu0 0
    %637 = vmatprep.subr.bf16.mxu0 0
    %638 = vmatpush1.bf16.msra.mxu0 0
    %639 = vmatprep.subr.bf16.mxu0 0
    %640 = vmatpush1.bf16.msra.mxu0 0
    %641 = vmatprep.subr.bf16.mxu0 0
    %642 = vmatpush1.bf16.msra.mxu0 0
    %643 = vmatprep.subr.bf16.mxu0 0
    %644 = vmatpush1.bf16.msra.mxu0 0
    %645 = vmatprep.subr.bf16.mxu0 0
    %646 = vmatpush1.bf16.msra.mxu0 0
    %647 = vmatprep.mubr.bf16.mxu0 0
    %648 = vmatmul.mubr.bf16.gmra.mrb[0].mxu0 %v398
    %v649 = vpop.f32.mrb[0].mxu0
    %v650 = vadd.f32 %v97, %v649
    %v651 = vpop.f32.mrb[0].mxu0
    %v652 = vadd.f32 %v97, %v651
    %v653 = vpop.f32.mrb[0].mxu0
    %v654 = vadd.f32 %v102, %v653
    %v655 = vpop.f32.mrb[0].mxu0
    %v656 = vadd.f32 %v102, %v655
    %657 = vmatprep.mubr.bf16.mxu0 0
    %658 = vmatmul.mubr.bf16.gmra.mrb[0].mxu0 %v401
    %v659 = vpop.f32.mrb[0].mxu0
    %v660 = vadd.f32 %v107, %v659
    %v661 = vpop.f32.mrb[0].mxu0
    %v662 = vadd.f32 %v107, %v661
    %v663 = vpop.f32.mrb[0].mxu0
    %v664 = vadd.f32 %v112, %v663
    %v665 = vpop.f32.mrb[0].mxu0
    %v666 = vadd.f32 %v112, %v665
    %667 = vdwg.mxu0
    %668 = vmatprep.subr.bf16.mxu0 %v299
    %669 = vmatpush1.bf16.msra.mxu0 %v298
    %670 = vmatprep.subr.bf16.mxu0 %v326
    %671 = vmatpush1.bf16.msra.mxu0 %v325
    %672 = vmatprep.subr.bf16.mxu0 0
    %673 = vmatpush1.bf16.msra.mxu0 0
    %674 = vmatprep.subr.bf16.mxu0 0
    %675 = vmatpush1.bf16.msra.mxu0 0
    %676 = vmatprep.subr.bf16.mxu0 0
    %677 = vmatpush1.bf16.msra.mxu0 0
    %678 = vmatprep.subr.bf16.mxu0 0
    %679 = vmatpush1.bf16.msra.mxu0 0
    %680 = vmatprep.subr.bf16.mxu0 0
    %681 = vmatpush1.bf16.msra.mxu0 0
    %682 = vmatprep.subr.bf16.mxu0 0
    %683 = vmatpush1.bf16.msra.mxu0 0
    %684 = vmatprep.subr.bf16.mxu0 0
    %685 = vmatpush1.bf16.msra.mxu0 0
    %686 = vmatprep.subr.bf16.mxu0 0
    %687 = vmatpush1.bf16.msra.mxu0 0
    %688 = vmatprep.subr.bf16.mxu0 0
    %689 = vmatpush1.bf16.msra.mxu0 0
    %690 = vmatprep.subr.bf16.mxu0 0
    %691 = vmatpush1.bf16.msra.mxu0 0
    %692 = vmatprep.subr.bf16.mxu0 0
    %693 = vmatpush1.bf16.msra.mxu0 0
    %694 = vmatprep.subr.bf16.mxu0 0
    %695 = vmatpush1.bf16.msra.mxu0 0
    %696 = vmatprep.subr.bf16.mxu0 0
    %697 = vmatpush1.bf16.msra.mxu0 0
    %698 = vmatprep.subr.bf16.mxu0 0
    %699 = vmatpush1.bf16.msra.mxu0 0
    %700 = vmatprep.mubr.bf16.mxu0 0
    %701 = vmatmul.mubr.bf16.gmra.mrb[0].mxu0 %v398
    %v702 = vpop.f32.mrb[0].mxu0
    %v703 = vadd.f32 %v97, %v702
    %v704 = vpop.f32.mrb[0].mxu0
    %v705 = vadd.f32 %v97, %v704
    %v706 = vpop.f32.mrb[0].mxu0
    %v707 = vadd.f32 %v102, %v706
    %v708 = vpop.f32.mrb[0].mxu0
    %v709 = vadd.f32 %v102, %v708
    %710 = vmatprep.mubr.bf16.mxu0 0
    %711 = vmatmul.mubr.bf16.gmra.mrb[0].mxu0 %v401
    %v712 = vpop.f32.mrb[0].mxu0
    %v713 = vadd.f32 %v107, %v712
    %v714 = vpop.f32.mrb[0].mxu0
    %v715 = vadd.f32 %v107, %v714
    %v716 = vpop.f32.mrb[0].mxu0
    %v717 = vadd.f32 %v112, %v716
    %v718 = vpop.f32.mrb[0].mxu0
    %v719 = vadd.f32 %v112, %v718
    %720 = vdwg.mxu0
    %721 = vmatprep.subr.bf16.mxu0 %v301
    %722 = vmatpush1.bf16.msra.mxu0 %v300
    %723 = vmatprep.subr.bf16.mxu0 %v328
    %724 = vmatpush1.bf16.msra.mxu0 %v327
    %725 = vmatprep.subr.bf16.mxu0 0
    %726 = vmatpush1.bf16.msra.mxu0 0
    %727 = vmatprep.subr.bf16.mxu0 0
    %728 = vmatpush1.bf16.msra.mxu0 0
    %729 = vmatprep.subr.bf16.mxu0 0
    %730 = vmatpush1.bf16.msra.mxu0 0
    %731 = vmatprep.subr.bf16.mxu0 0
    %732 = vmatpush1.bf16.msra.mxu0 0
    %733 = vmatprep.subr.bf16.mxu0 0
    %734 = vmatpush1.bf16.msra.mxu0 0
    %735 = vmatprep.subr.bf16.mxu0 0
    %736 = vmatpush1.bf16.msra.mxu0 0
    %737 = vmatprep.subr.bf16.mxu0 0
    %738 = vmatpush1.bf16.msra.mxu0 0
    %739 = vmatprep.subr.bf16.mxu0 0
    %740 = vmatpush1.bf16.msra.mxu0 0
    %741 = vmatprep.subr.bf16.mxu0 0
    %742 = vmatpush1.bf16.msra.mxu0 0
    %743 = vmatprep.subr.bf16.mxu0 0
    %744 = vmatpush1.bf16.msra.mxu0 0
    %745 = vmatprep.subr.bf16.mxu0 0
    %746 = vmatpush1.bf16.msra.mxu0 0
    %747 = vmatprep.subr.bf16.mxu0 0
    %748 = vmatpush1.bf16.msra.mxu0 0
    %749 = vmatprep.subr.bf16.mxu0 0
    %750 = vmatpush1.bf16.msra.mxu0 0
    %751 = vmatprep.subr.bf16.mxu0 0
    %752 = vmatpush1.bf16.msra.mxu0 0
    %753 = vmatprep.mubr.bf16.mxu0 0
    %754 = vmatmul.mubr.bf16.gmra.mrb[0].mxu0 %v398
    %v755 = vpop.f32.mrb[0].mxu0
    %v756 = vadd.f32 %v97, %v755
    %v757 = vpop.f32.mrb[0].mxu0
    %v758 = vadd.f32 %v97, %v757
    %v759 = vpop.f32.mrb[0].mxu0
    %v760 = vadd.f32 %v102, %v759
    %v761 = vpop.f32.mrb[0].mxu0
    %v762 = vadd.f32 %v102, %v761
    %763 = vmatprep.mubr.bf16.mxu0 0
    %764 = vmatmul.mubr.bf16.gmra.mrb[0].mxu0 %v401
    %v765 = vpop.f32.mrb[0].mxu0
    %v766 = vadd.f32 %v107, %v765
    %v767 = vpop.f32.mrb[0].mxu0
    %v768 = vadd.f32 %v107, %v767
    %v769 = vpop.f32.mrb[0].mxu0
    %v770 = vadd.f32 %v112, %v769
    %v771 = vpop.f32.mrb[0].mxu0
    %v772 = vadd.f32 %v112, %v771
    %773 = vdwg.mxu0
    %774 = vmatprep.subr.bf16.mxu0 %v303
    %775 = vmatpush1.bf16.msra.mxu0 %v302
    %776 = vmatprep.subr.bf16.mxu0 %v330
    %777 = vmatpush1.bf16.msra.mxu0 %v329
    %778 = vmatprep.subr.bf16.mxu0 0
    %779 = vmatpush1.bf16.msra.mxu0 0
    %780 = vmatprep.subr.bf16.mxu0 0
    %781 = vmatpush1.bf16.msra.mxu0 0
    %782 = vmatprep.subr.bf16.mxu0 0
    %783 = vmatpush1.bf16.msra.mxu0 0
    %784 = vmatprep.subr.bf16.mxu0 0
    %785 = vmatpush1.bf16.msra.mxu0 0
    %786 = vmatprep.subr.bf16.mxu0 0
    %787 = vmatpush1.bf16.msra.mxu0 0
    %788 = vmatprep.subr.bf16.mxu0 0
    %789 = vmatpush1.bf16.msra.mxu0 0
    %790 = vmatprep.subr.bf16.mxu0 0
    %791 = vmatpush1.bf16.msra.mxu0 0
    %792 = vmatprep.subr.bf16.mxu0 0
    %793 = vmatpush1.bf16.msra.mxu0 0
    %794 = vmatprep.subr.bf16.mxu0 0
    %795 = vmatpush1.bf16.msra.mxu0 0
    %796 = vmatprep.subr.bf16.mxu0 0
    %797 = vmatpush1.bf16.msra.mxu0 0
    %798 = vmatprep.subr.bf16.mxu0 0
    %799 = vmatpush1.bf16.msra.mxu0 0
    %800 = vmatprep.subr.bf16.mxu0 0
    %801 = vmatpush1.bf16.msra.mxu0 0
    %802 = vmatprep.subr.bf16.mxu0 0
    %803 = vmatpush1.bf16.msra.mxu0 0
    %804 = vmatprep.subr.bf16.mxu0 0
    %805 = vmatpush1.bf16.msra.mxu0 0
    %806 = vmatprep.mubr.bf16.mxu0 0
    %807 = vmatmul.mubr.bf16.gmra.mrb[0].mxu0 %v398
    %v808 = vpop.f32.mrb[0].mxu0
    %v809 = vadd.f32 %v97, %v808
    %v810 = vpop.f32.mrb[0].mxu0
    %v811 = vadd.f32 %v97, %v810
    %v812 = vpop.f32.mrb[0].mxu0
    %v813 = vadd.f32 %v102, %v812
    %v814 = vpop.f32.mrb[0].mxu0
    %v815 = vadd.f32 %v102, %v814
    %816 = vmatprep.mubr.bf16.mxu0 0
    %817 = vmatmul.mubr.bf16.gmra.mrb[0].mxu0 %v401
    %v818 = vpop.f32.mrb[0].mxu0
    %v819 = vadd.f32 %v107, %v818
    %v820 = vpop.f32.mrb[0].mxu0
    %v821 = vadd.f32 %v107, %v820
    %v822 = vpop.f32.mrb[0].mxu0
    %v823 = vadd.f32 %v112, %v822
    %v824 = vpop.f32.mrb[0].mxu0
    %v825 = vadd.f32 %v112, %v824
    %826 = vdwg.mxu0
    %827 = vmatprep.subr.bf16.mxu0 %v305
    %828 = vmatpush1.bf16.msra.mxu0 %v304
    %829 = vmatprep.subr.bf16.mxu0 %v332
    %830 = vmatpush1.bf16.msra.mxu0 %v331
    %831 = vmatprep.subr.bf16.mxu0 0
    %832 = vmatpush1.bf16.msra.mxu0 0
    %833 = vmatprep.subr.bf16.mxu0 0
    %834 = vmatpush1.bf16.msra.mxu0 0
    %835 = vmatprep.subr.bf16.mxu0 0
    %836 = vmatpush1.bf16.msra.mxu0 0
    %837 = vmatprep.subr.bf16.mxu0 0
    %838 = vmatpush1.bf16.msra.mxu0 0
    %839 = vmatprep.subr.bf16.mxu0 0
    %840 = vmatpush1.bf16.msra.mxu0 0
    %841 = vmatprep.subr.bf16.mxu0 0
    %842 = vmatpush1.bf16.msra.mxu0 0
    %843 = vmatprep.subr.bf16.mxu0 0
    %844 = vmatpush1.bf16.msra.mxu0 0
    %845 = vmatprep.subr.bf16.mxu0 0
    %846 = vmatpush1.bf16.msra.mxu0 0
    %847 = vmatprep.subr.bf16.mxu0 0
    %848 = vmatpush1.bf16.msra.mxu0 0
    %849 = vmatprep.subr.bf16.mxu0 0
    %850 = vmatpush1.bf16.msra.mxu0 0
    %851 = vmatprep.subr.bf16.mxu0 0
    %852 = vmatpush1.bf16.msra.mxu0 0
    %853 = vmatprep.subr.bf16.mxu0 0
    %854 = vmatpush1.bf16.msra.mxu0 0
    %855 = vmatprep.subr.bf16.mxu0 0
    %856 = vmatpush1.bf16.msra.mxu0 0
    %857 = vmatprep.subr.bf16.mxu0 0
    %858 = vmatpush1.bf16.msra.mxu0 0
    %859 = vmatprep.mubr.bf16.mxu0 0
    %860 = vmatmul.mubr.bf16.gmra.mrb[0].mxu0 %v398
    %v861 = vpop.f32.mrb[0].mxu0
    %v862 = vadd.f32 %v97, %v861
    %v863 = vpop.f32.mrb[0].mxu0
    %v864 = vadd.f32 %v97, %v863
    %v865 = vpop.f32.mrb[0].mxu0
    %v866 = vadd.f32 %v102, %v865
    %v867 = vpop.f32.mrb[0].mxu0
    %v868 = vadd.f32 %v102, %v867
    %869 = vmatprep.mubr.bf16.mxu0 0
    %870 = vmatmul.mubr.bf16.gmra.mrb[0].mxu0 %v401
    %v871 = vpop.f32.mrb[0].mxu0
    %v872 = vadd.f32 %v107, %v871
    %v873 = vpop.f32.mrb[0].mxu0
    %v874 = vadd.f32 %v107, %v873
    %v875 = vpop.f32.mrb[0].mxu0
    %v876 = vadd.f32 %v112, %v875
    %v877 = vpop.f32.mrb[0].mxu0
    %v878 = vadd.f32 %v112, %v877
    %879 = vdwg.mxu0
    %880 = vmatprep.subr.bf16.mxu0 %v307
    %881 = vmatpush1.bf16.msra.mxu0 %v306
    %882 = vmatprep.subr.bf16.mxu0 %v334
    %883 = vmatpush1.bf16.msra.mxu0 %v333
    %884 = vmatprep.subr.bf16.mxu0 0
    %885 = vmatpush1.bf16.msra.mxu0 0
    %886 = vmatprep.subr.bf16.mxu0 0
    %887 = vmatpush1.bf16.msra.mxu0 0
    %888 = vmatprep.subr.bf16.mxu0 0
    %889 = vmatpush1.bf16.msra.mxu0 0
    %890 = vmatprep.subr.bf16.mxu0 0
    %891 = vmatpush1.bf16.msra.mxu0 0
    %892 = vmatprep.subr.bf16.mxu0 0
    %893 = vmatpush1.bf16.msra.mxu0 0
    %894 = vmatprep.subr.bf16.mxu0 0
    %895 = vmatpush1.bf16.msra.mxu0 0
    %896 = vmatprep.subr.bf16.mxu0 0
    %897 = vmatpush1.bf16.msra.mxu0 0
    %898 = vmatprep.subr.bf16.mxu0 0
    %899 = vmatpush1.bf16.msra.mxu0 0
    %900 = vmatprep.subr.bf16.mxu0 0
    %901 = vmatpush1.bf16.msra.mxu0 0
    %902 = vmatprep.subr.bf16.mxu0 0
    %903 = vmatpush1.bf16.msra.mxu0 0
    %904 = vmatprep.subr.bf16.mxu0 0
    %905 = vmatpush1.bf16.msra.mxu0 0
    %906 = vmatprep.subr.bf16.mxu0 0
    %907 = vmatpush1.bf16.msra.mxu0 0
    %908 = vmatprep.subr.bf16.mxu0 0
    %909 = vmatpush1.bf16.msra.mxu0 0
    %910 = vmatprep.subr.bf16.mxu0 0
    %911 = vmatpush1.bf16.msra.mxu0 0
    %912 = vmatprep.mubr.bf16.mxu0 0
    %913 = vmatmul.mubr.bf16.gmra.mrb[0].mxu0 %v398
    %v914 = vpop.f32.mrb[0].mxu0
    %v915 = vadd.f32 %v97, %v914
    %v916 = vpop.f32.mrb[0].mxu0
    %v917 = vadd.f32 %v97, %v916
    %v918 = vpop.f32.mrb[0].mxu0
    %v919 = vadd.f32 %v102, %v918
    %v920 = vpop.f32.mrb[0].mxu0
    %v921 = vadd.f32 %v102, %v920
    %922 = vmatprep.mubr.bf16.mxu0 0
    %923 = vmatmul.mubr.bf16.gmra.mrb[0].mxu0 %v401
    %v924 = vpop.f32.mrb[0].mxu0
    %v925 = vadd.f32 %v107, %v924
    %v926 = vpop.f32.mrb[0].mxu0
    %v927 = vadd.f32 %v107, %v926
    %v928 = vpop.f32.mrb[0].mxu0
    %v929 = vadd.f32 %v112, %v928
    %v930 = vpop.f32.mrb[0].mxu0
    %v931 = vadd.f32 %v112, %v930
    %932 = vdwg.mxu0
    %933 = vmatprep.subr.bf16.mxu0 %v309
    %934 = vmatpush1.bf16.msra.mxu0 %v308
    %935 = vmatprep.subr.bf16.mxu0 %v336
    %936 = vmatpush1.bf16.msra.mxu0 %v335
    %937 = vmatprep.subr.bf16.mxu0 0
    %938 = vmatpush1.bf16.msra.mxu0 0
    %939 = vmatprep.subr.bf16.mxu0 0
    %940 = vmatpush1.bf16.msra.mxu0 0
    %941 = vmatprep.subr.bf16.mxu0 0
    %942 = vmatpush1.bf16.msra.mxu0 0
    %943 = vmatprep.subr.bf16.mxu0 0
    %944 = vmatpush1.bf16.msra.mxu0 0
    %945 = vmatprep.subr.bf16.mxu0 0
    %946 = vmatpush1.bf16.msra.mxu0 0
    %947 = vmatprep.subr.bf16.mxu0 0
    %948 = vmatpush1.bf16.msra.mxu0 0
    %949 = vmatprep.subr.bf16.mxu0 0
    %950 = vmatpush1.bf16.msra.mxu0 0
    %951 = vmatprep.subr.bf16.mxu0 0
    %952 = vmatpush1.bf16.msra.mxu0 0
    %953 = vmatprep.subr.bf16.mxu0 0
    %954 = vmatpush1.bf16.msra.mxu0 0
    %955 = vmatprep.subr.bf16.mxu0 0
    %956 = vmatpush1.bf16.msra.mxu0 0
    %957 = vmatprep.subr.bf16.mxu0 0
    %958 = vmatpush1.bf16.msra.mxu0 0
    %959 = vmatprep.subr.bf16.mxu0 0
    %960 = vmatpush1.bf16.msra.mxu0 0
    %961 = vmatprep.subr.bf16.mxu0 0
    %962 = vmatpush1.bf16.msra.mxu0 0
    %963 = vmatprep.subr.bf16.mxu0 0
    %964 = vmatpush1.bf16.msra.mxu0 0
    %965 = vmatprep.mubr.bf16.mxu0 0
    %966 = vmatmul.mubr.bf16.gmra.mrb[0].mxu0 %v398
    %v967 = vpop.f32.mrb[0].mxu0
    %v968 = vadd.f32 %v97, %v967
    %v969 = vpop.f32.mrb[0].mxu0
    %v970 = vadd.f32 %v97, %v969
    %v971 = vpop.f32.mrb[0].mxu0
    %v972 = vadd.f32 %v102, %v971
    %v973 = vpop.f32.mrb[0].mxu0
    %v974 = vadd.f32 %v102, %v973
    %975 = vmatprep.mubr.bf16.mxu0 0
    %976 = vmatmul.mubr.bf16.gmra.mrb[0].mxu0 %v401
    %v977 = vpop.f32.mrb[0].mxu0
    %v978 = vadd.f32 %v107, %v977
    %v979 = vpop.f32.mrb[0].mxu0
    %v980 = vadd.f32 %v107, %v979
    %v981 = vpop.f32.mrb[0].mxu0
    %v982 = vadd.f32 %v112, %v981
    %v983 = vpop.f32.mrb[0].mxu0
    %v984 = vadd.f32 %v112, %v983
    %985 = vdwg.mxu0
    %986 = vmatprep.subr.bf16.mxu0 %v311
    %987 = vmatpush1.bf16.msra.mxu0 %v310
    %988 = vmatprep.subr.bf16.mxu0 %v338
    %989 = vmatpush1.bf16.msra.mxu0 %v337
    %990 = vmatprep.subr.bf16.mxu0 0
    %991 = vmatpush1.bf16.msra.mxu0 0
    %992 = vmatprep.subr.bf16.mxu0 0
    %993 = vmatpush1.bf16.msra.mxu0 0
    %994 = vmatprep.subr.bf16.mxu0 0
    %995 = vmatpush1.bf16.msra.mxu0 0
    %996 = vmatprep.subr.bf16.mxu0 0
    %997 = vmatpush1.bf16.msra.mxu0 0
    %998 = vmatprep.subr.bf16.mxu0 0
    %999 = vmatpush1.bf16.msra.mxu0 0
    %1000 = vmatprep.subr.bf16.mxu0 0
    %1001 = vmatpush1.bf16.msra.mxu0 0
    %1002 = vmatprep.subr.bf16.mxu0 0
    %1003 = vmatpush1.bf16.msra.mxu0 0
    %1004 = vmatprep.subr.bf16.mxu0 0
    %1005 = vmatpush1.bf16.msra.mxu0 0
    %1006 = vmatprep.subr.bf16.mxu0 0
    %1007 = vmatpush1.bf16.msra.mxu0 0
    %1008 = vmatprep.subr.bf16.mxu0 0
    %1009 = vmatpush1.bf16.msra.mxu0 0
    %1010 = vmatprep.subr.bf16.mxu0 0
    %1011 = vmatpush1.bf16.msra.mxu0 0
    %1012 = vmatprep.subr.bf16.mxu0 0
    %1013 = vmatpush1.bf16.msra.mxu0 0
    %1014 = vmatprep.subr.bf16.mxu0 0
    %1015 = vmatpush1.bf16.msra.mxu0 0
    %1016 = vmatprep.subr.bf16.mxu0 0
    %1017 = vmatpush1.bf16.msra.mxu0 0
    %1018 = vmatprep.mubr.bf16.mxu0 0
    %1019 = vmatmul.mubr.bf16.gmra.mrb[0].mxu0 %v398
    %v1020 = vpop.f32.mrb[0].mxu0
    %v1021 = vadd.f32 %v97, %v1020
    %v1022 = vpop.f32.mrb[0].mxu0
    %v1023 = vadd.f32 %v97, %v1022
    %v1024 = vpop.f32.mrb[0].mxu0
    %v1025 = vadd.f32 %v102, %v1024
    %v1026 = vpop.f32.mrb[0].mxu0
    %v1027 = vadd.f32 %v102, %v1026
    %1028 = vmatprep.mubr.bf16.mxu0 0
    %1029 = vmatmul.mubr.bf16.gmra.mrb[0].mxu0 %v401
    %v1030 = vpop.f32.mrb[0].mxu0
    %v1031 = vadd.f32 %v107, %v1030
    %v1032 = vpop.f32.mrb[0].mxu0
    %v1033 = vadd.f32 %v107, %v1032
    %v1034 = vpop.f32.mrb[0].mxu0
    %v1035 = vadd.f32 %v112, %v1034
    %v1036 = vpop.f32.mrb[0].mxu0
    %v1037 = vadd.f32 %v112, %v1036
    %1038 = vdwg.mxu0
    %1039 = vmatprep.subr.bf16.mxu0 %v313
    %1040 = vmatpush1.bf16.msra.mxu0 %v312
    %1041 = vmatprep.subr.bf16.mxu0 %v340
    %1042 = vmatpush1.bf16.msra.mxu0 %v339
    %1043 = vmatprep.subr.bf16.mxu0 0
    %1044 = vmatpush1.bf16.msra.mxu0 0
    %1045 = vmatprep.subr.bf16.mxu0 0
    %1046 = vmatpush1.bf16.msra.mxu0 0
    %1047 = vmatprep.subr.bf16.mxu0 0
    %1048 = vmatpush1.bf16.msra.mxu0 0
    %1049 = vmatprep.subr.bf16.mxu0 0
    %1050 = vmatpush1.bf16.msra.mxu0 0
    %1051 = vmatprep.subr.bf16.mxu0 0
    %1052 = vmatpush1.bf16.msra.mxu0 0
    %1053 = vmatprep.subr.bf16.mxu0 0
    %1054 = vmatpush1.bf16.msra.mxu0 0
    %1055 = vmatprep.subr.bf16.mxu0 0
    %1056 = vmatpush1.bf16.msra.mxu0 0
    %1057 = vmatprep.subr.bf16.mxu0 0
    %1058 = vmatpush1.bf16.msra.mxu0 0
    %1059 = vmatprep.subr.bf16.mxu0 0
    %1060 = vmatpush1.bf16.msra.mxu0 0
    %1061 = vmatprep.subr.bf16.mxu0 0
    %1062 = vmatpush1.bf16.msra.mxu0 0
    %1063 = vmatprep.subr.bf16.mxu0 0
    %1064 = vmatpush1.bf16.msra.mxu0 0
    %1065 = vmatprep.subr.bf16.mxu0 0
    %1066 = vmatpush1.bf16.msra.mxu0 0
    %1067 = vmatprep.subr.bf16.mxu0 0
    %1068 = vmatpush1.bf16.msra.mxu0 0
    %1069 = vmatprep.subr.bf16.mxu0 0
    %1070 = vmatpush1.bf16.msra.mxu0 0
    %1071 = vmatprep.mubr.bf16.mxu0 0
    %1072 = vmatmul.mubr.bf16.gmra.mrb[0].mxu0 %v398
    %v1073 = vpop.f32.mrb[0].mxu0
    %v1074 = vadd.f32 %v97, %v1073
    %v1075 = vpop.f32.mrb[0].mxu0
    %v1076 = vadd.f32 %v97, %v1075
    %v1077 = vpop.f32.mrb[0].mxu0
    %v1078 = vadd.f32 %v102, %v1077
    %v1079 = vpop.f32.mrb[0].mxu0
    %v1080 = vadd.f32 %v102, %v1079
    %1081 = vmatprep.mubr.bf16.mxu0 0
    %1082 = vmatmul.mubr.bf16.gmra.mrb[0].mxu0 %v401
    %v1083 = vpop.f32.mrb[0].mxu0
    %v1084 = vadd.f32 %v107, %v1083
    %v1085 = vpop.f32.mrb[0].mxu0
    %v1086 = vadd.f32 %v107, %v1085
    %v1087 = vpop.f32.mrb[0].mxu0
    %v1088 = vadd.f32 %v112, %v1087
    %v1089 = vpop.f32.mrb[0].mxu0
    %v1090 = vadd.f32 %v112, %v1089
    %1091 = vdwg.mxu0
    %1092 = vmatprep.subr.bf16.mxu0 0
    %1093 = vmatpush1.bf16.msra.mxu0 %v314
    %1094 = vmatprep.subr.bf16.mxu0 0
    %1095 = vmatpush1.bf16.msra.mxu0 %v341
    %1096 = vmatprep.subr.bf16.mxu0 0
    %1097 = vmatpush1.bf16.msra.mxu0 0
    %1098 = vmatprep.subr.bf16.mxu0 0
    %1099 = vmatpush1.bf16.msra.mxu0 0
    %1100 = vmatprep.subr.bf16.mxu0 0
    %1101 = vmatpush1.bf16.msra.mxu0 0
    %1102 = vmatprep.subr.bf16.mxu0 0
    %1103 = vmatpush1.bf16.msra.mxu0 0
    %1104 = vmatprep.subr.bf16.mxu0 0
    %1105 = vmatpush1.bf16.msra.mxu0 0
    %1106 = vmatprep.subr.bf16.mxu0 0
    %1107 = vmatpush1.bf16.msra.mxu0 0
    %1108 = vmatprep.subr.bf16.mxu0 0
    %1109 = vmatpush1.bf16.msra.mxu0 0
    %1110 = vmatprep.subr.bf16.mxu0 0
    %1111 = vmatpush1.bf16.msra.mxu0 0
    %1112 = vmatprep.subr.bf16.mxu0 0
    %1113 = vmatpush1.bf16.msra.mxu0 0
    %1114 = vmatprep.subr.bf16.mxu0 0
    %1115 = vmatpush1.bf16.msra.mxu0 0
    %1116 = vmatprep.subr.bf16.mxu0 0
    %1117 = vmatpush1.bf16.msra.mxu0 0
    %1118 = vmatprep.subr.bf16.mxu0 0
    %1119 = vmatpush1.bf16.msra.mxu0 0
    %1120 = vmatprep.subr.bf16.mxu0 0
    %1121 = vmatpush1.bf16.msra.mxu0 0
    %1122 = vmatprep.subr.bf16.mxu0 0
    %1123 = vmatpush1.bf16.msra.mxu0 0
    %1124 = vmatprep.mubr.bf16.mxu0 0
    %1125 = vmatmul.mubr.bf16.gmra.mrb[0].mxu0 %v398
    %v1126 = vpop.f32.mrb[0].mxu0
    %v1127 = vadd.f32 %v97, %v1126
    %v1128 = vpop.f32.mrb[0].mxu0
    %v1129 = vpop.f32.mrb[0].mxu0
    %v1130 = vadd.f32 %v102, %v1129
    %v1131 = vpop.f32.mrb[0].mxu0
    %1132 = vmatprep.mubr.bf16.mxu0 0
    %1133 = vmatmul.mubr.bf16.gmra.mrb[0].mxu0 %v401
    %v1134 = vpop.f32.mrb[0].mxu0
    %v1135 = vadd.f32 %v107, %v1134
    %v1136 = vpop.f32.mrb[0].mxu0
    %v1137 = vpop.f32.mrb[0].mxu0
    %v1138 = vadd.f32 %v112, %v1137
    %v1139 = vpop.f32.mrb[0].mxu0
    %1140 = vdwg.mxu0
    %v1141 = vmax.f32 %v438, 0.0
    %v1142 = vmax.f32 %v440, 0.0
    %v1143 = vmax.f32 %v491, 0.0
    %v1144 = vmax.f32 %v493, 0.0
    %v1145 = vmax.f32 %v544, 0.0
    %v1146 = vmax.f32 %v546, 0.0
    %v1147 = vmax.f32 %v597, 0.0
    %v1148 = vmax.f32 %v599, 0.0
    %v1149 = vmax.f32 %v650, 0.0
    %v1150 = vmax.f32 %v652, 0.0
    %v1151 = vmax.f32 %v703, 0.0
    %v1152 = vmax.f32 %v705, 0.0
    %v1153 = vmax.f32 %v756, 0.0
    %v1154 = vmax.f32 %v758, 0.0
    %v1155 = vmax.f32 %v809, 0.0
    %v1156 = vmax.f32 %v811, 0.0
    %v1157 = vmax.f32 %v862, 0.0
    %v1158 = vmax.f32 %v864, 0.0
    %v1159 = vmax.f32 %v915, 0.0
    %v1160 = vmax.f32 %v917, 0.0
    %v1161 = vmax.f32 %v968, 0.0
    %v1162 = vmax.f32 %v970, 0.0
    %v1163 = vmax.f32 %v1021, 0.0
    %v1164 = vmax.f32 %v1023, 0.0
    %v1165 = vmax.f32 %v1074, 0.0
    %v1166 = vmax.f32 %v1076, 0.0
    %v1167 = vmax.f32 %v1127, 0.0
    %v1168 = vmax.f32 %v442, 0.0
    %v1169 = vmax.f32 %v444, 0.0
    %v1170 = vmax.f32 %v495, 0.0
    %v1171 = vmax.f32 %v497, 0.0
    %v1172 = vmax.f32 %v548, 0.0
    %v1173 = vmax.f32 %v550, 0.0
    %v1174 = vmax.f32 %v601, 0.0
    %v1175 = vmax.f32 %v603, 0.0
    %v1176 = vmax.f32 %v654, 0.0
    %v1177 = vmax.f32 %v656, 0.0
    %v1178 = vmax.f32 %v707, 0.0
    %v1179 = vmax.f32 %v709, 0.0
    %v1180 = vmax.f32 %v760, 0.0
    %v1181 = vmax.f32 %v762, 0.0
    %v1182 = vmax.f32 %v813, 0.0
    %v1183 = vmax.f32 %v815, 0.0
    %v1184 = vmax.f32 %v866, 0.0
    %v1185 = vmax.f32 %v868, 0.0
    %v1186 = vmax.f32 %v919, 0.0
    %v1187 = vmax.f32 %v921, 0.0
    %v1188 = vmax.f32 %v972, 0.0
    %v1189 = vmax.f32 %v974, 0.0
    %v1190 = vmax.f32 %v1025, 0.0
    %v1191 = vmax.f32 %v1027, 0.0
    %v1192 = vmax.f32 %v1078, 0.0
    %v1193 = vmax.f32 %v1080, 0.0
    %v1194 = vmax.f32 %v1130, 0.0
    %v1195 = vmax.f32 %v448, 0.0
    %v1196 = vmax.f32 %v450, 0.0
    %v1197 = vmax.f32 %v501, 0.0
    %v1198 = vmax.f32 %v503, 0.0
    %v1199 = vmax.f32 %v554, 0.0
    %v1200 = vmax.f32 %v556, 0.0
    %v1201 = vmax.f32 %v607, 0.0
    %v1202 = vmax.f32 %v609, 0.0
    %v1203 = vmax.f32 %v660, 0.0
    %v1204 = vmax.f32 %v662, 0.0
    %v1205 = vmax.f32 %v713, 0.0
    %v1206 = vmax.f32 %v715, 0.0
    %v1207 = vmax.f32 %v766, 0.0
    %v1208 = vmax.f32 %v768, 0.0
    %v1209 = vmax.f32 %v819, 0.0
    %v1210 = vmax.f32 %v821, 0.0
    %v1211 = vmax.f32 %v872, 0.0
    %v1212 = vmax.f32 %v874, 0.0
    %v1213 = vmax.f32 %v925, 0.0
    %v1214 = vmax.f32 %v927, 0.0
    %v1215 = vmax.f32 %v978, 0.0
    %v1216 = vmax.f32 %v980, 0.0
    %v1217 = vmax.f32 %v1031, 0.0
    %v1218 = vmax.f32 %v1033, 0.0
    %v1219 = vmax.f32 %v1084, 0.0
    %v1220 = vmax.f32 %v1086, 0.0
    %v1221 = vmax.f32 %v1135, 0.0
    %v1222 = vmax.f32 %v452, 0.0
    %v1223 = vmax.f32 %v454, 0.0
    %v1224 = vmax.f32 %v505, 0.0
    %v1225 = vmax.f32 %v507, 0.0
    %v1226 = vmax.f32 %v558, 0.0
    %v1227 = vmax.f32 %v560, 0.0
    %v1228 = vmax.f32 %v611, 0.0
    %v1229 = vmax.f32 %v613, 0.0
    %v1230 = vmax.f32 %v664, 0.0
    %v1231 = vmax.f32 %v666, 0.0
    %v1232 = vmax.f32 %v717, 0.0
    %v1233 = vmax.f32 %v719, 0.0
    %v1234 = vmax.f32 %v770, 0.0
    %v1235 = vmax.f32 %v772, 0.0
    %v1236 = vmax.f32 %v823, 0.0
    %v1237 = vmax.f32 %v825, 0.0
    %v1238 = vmax.f32 %v876, 0.0
    %v1239 = vmax.f32 %v878, 0.0
    %v1240 = vmax.f32 %v929, 0.0
    %v1241 = vmax.f32 %v931, 0.0
    %v1242 = vmax.f32 %v982, 0.0
    %v1243 = vmax.f32 %v984, 0.0
    %v1244 = vmax.f32 %v1035, 0.0
    %v1245 = vmax.f32 %v1037, 0.0
    %v1246 = vmax.f32 %v1088, 0.0
    %v1247 = vmax.f32 %v1090, 0.0
    %v1248 = vmax.f32 %v1138, 0.0
    %v1249 = vpack.c.bf16 %v1168, %v1141
    %v1250 = vpack.c.bf16 %v1169, %v1142
    %v1251 = vpack.c.bf16 %v1170, %v1143
    %v1252 = vpack.c.bf16 %v1171, %v1144
    %v1253 = vpack.c.bf16 %v1172, %v1145
    %v1254 = vpack.c.bf16 %v1173, %v1146
    %v1255 = vpack.c.bf16 %v1174, %v1147
    %v1256 = vpack.c.bf16 %v1175, %v1148
    %v1257 = vpack.c.bf16 %v1176, %v1149
    %v1258 = vpack.c.bf16 %v1177, %v1150
    %v1259 = vpack.c.bf16 %v1178, %v1151
    %v1260 = vpack.c.bf16 %v1179, %v1152
    %v1261 = vpack.c.bf16 %v1180, %v1153
    %v1262 = vpack.c.bf16 %v1181, %v1154
    %v1263 = vpack.c.bf16 %v1182, %v1155
    %v1264 = vpack.c.bf16 %v1183, %v1156
    %v1265 = vpack.c.bf16 %v1184, %v1157
    %v1266 = vpack.c.bf16 %v1185, %v1158
    %v1267 = vpack.c.bf16 %v1186, %v1159
    %v1268 = vpack.c.bf16 %v1187, %v1160
    %v1269 = vpack.c.bf16 %v1188, %v1161
    %v1270 = vpack.c.bf16 %v1189, %v1162
    %v1271 = vpack.c.bf16 %v1190, %v1163
    %v1272 = vpack.c.bf16 %v1191, %v1164
    %v1273 = vpack.c.bf16 %v1192, %v1165
    %v1274 = vpack.c.bf16 %v1193, %v1166
    %v1275 = vpack.c.bf16 %v1194, %v1167
    %v1276 = vpack.c.bf16 %v1222, %v1195
    %v1277 = vpack.c.bf16 %v1223, %v1196
    %v1278 = vpack.c.bf16 %v1224, %v1197
    %v1279 = vpack.c.bf16 %v1225, %v1198
    %v1280 = vpack.c.bf16 %v1226, %v1199
    %v1281 = vpack.c.bf16 %v1227, %v1200
    %v1282 = vpack.c.bf16 %v1228, %v1201
    %v1283 = vpack.c.bf16 %v1229, %v1202
    %v1284 = vpack.c.bf16 %v1230, %v1203
    %v1285 = vpack.c.bf16 %v1231, %v1204
    %v1286 = vpack.c.bf16 %v1232, %v1205
    %v1287 = vpack.c.bf16 %v1233, %v1206
    %v1288 = vpack.c.bf16 %v1234, %v1207
    %v1289 = vpack.c.bf16 %v1235, %v1208
    %v1290 = vpack.c.bf16 %v1236, %v1209
    %v1291 = vpack.c.bf16 %v1237, %v1210
    %v1292 = vpack.c.bf16 %v1238, %v1211
    %v1293 = vpack.c.bf16 %v1239, %v1212
    %v1294 = vpack.c.bf16 %v1240, %v1213
    %v1295 = vpack.c.bf16 %v1241, %v1214
    %v1296 = vpack.c.bf16 %v1242, %v1215
    %v1297 = vpack.c.bf16 %v1243, %v1216
    %v1298 = vpack.c.bf16 %v1244, %v1217
    %v1299 = vpack.c.bf16 %v1245, %v1218
    %v1300 = vpack.c.bf16 %v1246, %v1219
    %v1301 = vpack.c.bf16 %v1247, %v1220
    %v1302 = vpack.c.bf16 %v1248, %v1221
    %v1357 = vunpack.c.l.b16 %v1249
    %v1358 = vunpack.c.l.b16 %v1250
    %v1359 = vunpack.c.l.b16 %v1251
    %v1360 = vunpack.c.l.b16 %v1252
    %v1361 = vunpack.c.l.b16 %v1253
    %v1362 = vunpack.c.l.b16 %v1254
    %v1363 = vunpack.c.l.b16 %v1255
    %v1364 = vunpack.c.l.b16 %v1256
    %v1365 = vunpack.c.l.b16 %v1257
    %v1366 = vunpack.c.l.b16 %v1258
    %v1367 = vunpack.c.l.b16 %v1259
    %v1368 = vunpack.c.l.b16 %v1260
    %v1369 = vunpack.c.l.b16 %v1261
    %v1370 = vunpack.c.l.b16 %v1262
    %v1371 = vunpack.c.l.b16 %v1263
    %v1372 = vunpack.c.l.b16 %v1264
    %v1373 = vunpack.c.l.b16 %v1265
    %v1374 = vunpack.c.l.b16 %v1266
    %v1375 = vunpack.c.l.b16 %v1267
    %v1376 = vunpack.c.l.b16 %v1268
    %v1377 = vunpack.c.l.b16 %v1269
    %v1378 = vunpack.c.l.b16 %v1270
    %v1379 = vunpack.c.l.b16 %v1271
    %v1380 = vunpack.c.l.b16 %v1272
    %v1381 = vunpack.c.l.b16 %v1273
    %v1382 = vunpack.c.l.b16 %v1274
    %v1383 = vunpack.c.l.b16 %v1275
    %v1384 = vunpack.c.h.b16 %v1249
    %v1385 = vunpack.c.h.b16 %v1250
    %v1386 = vunpack.c.h.b16 %v1251
    %v1387 = vunpack.c.h.b16 %v1252
    %v1388 = vunpack.c.h.b16 %v1253
    %v1389 = vunpack.c.h.b16 %v1254
    %v1390 = vunpack.c.h.b16 %v1255
    %v1391 = vunpack.c.h.b16 %v1256
    %v1392 = vunpack.c.h.b16 %v1257
    %v1393 = vunpack.c.h.b16 %v1258
    %v1394 = vunpack.c.h.b16 %v1259
    %v1395 = vunpack.c.h.b16 %v1260
    %v1396 = vunpack.c.h.b16 %v1261
    %v1397 = vunpack.c.h.b16 %v1262
    %v1398 = vunpack.c.h.b16 %v1263
    %v1399 = vunpack.c.h.b16 %v1264
    %v1400 = vunpack.c.h.b16 %v1265
    %v1401 = vunpack.c.h.b16 %v1266
    %v1402 = vunpack.c.h.b16 %v1267
    %v1403 = vunpack.c.h.b16 %v1268
    %v1404 = vunpack.c.h.b16 %v1269
    %v1405 = vunpack.c.h.b16 %v1270
    %v1406 = vunpack.c.h.b16 %v1271
    %v1407 = vunpack.c.h.b16 %v1272
    %v1408 = vunpack.c.h.b16 %v1273
    %v1409 = vunpack.c.h.b16 %v1274
    %v1410 = vunpack.c.h.b16 %v1275
    %v1411 = vunpack.c.l.b16 %v1276
    %v1412 = vunpack.c.l.b16 %v1277
    %v1413 = vunpack.c.l.b16 %v1278
    %v1414 = vunpack.c.l.b16 %v1279
    %v1415 = vunpack.c.l.b16 %v1280
    %v1416 = vunpack.c.l.b16 %v1281
    %v1417 = vunpack.c.l.b16 %v1282
    %v1418 = vunpack.c.l.b16 %v1283
    %v1419 = vunpack.c.l.b16 %v1284
    %v1420 = vunpack.c.l.b16 %v1285
    %v1421 = vunpack.c.l.b16 %v1286
    %v1422 = vunpack.c.l.b16 %v1287
    %v1423 = vunpack.c.l.b16 %v1288
    %v1424 = vunpack.c.l.b16 %v1289
    %v1425 = vunpack.c.l.b16 %v1290
    %v1426 = vunpack.c.l.b16 %v1291
    %v1427 = vunpack.c.l.b16 %v1292
    %v1428 = vunpack.c.l.b16 %v1293
    %v1429 = vunpack.c.l.b16 %v1294
    %v1430 = vunpack.c.l.b16 %v1295
    %v1431 = vunpack.c.l.b16 %v1296
    %v1432 = vunpack.c.l.b16 %v1297
    %v1433 = vunpack.c.l.b16 %v1298
    %v1434 = vunpack.c.l.b16 %v1299
    %v1435 = vunpack.c.l.b16 %v1300
    %v1436 = vunpack.c.l.b16 %v1301
    %v1437 = vunpack.c.l.b16 %v1302
    %v1438 = vunpack.c.h.b16 %v1276
    %v1439 = vunpack.c.h.b16 %v1277
    %v1440 = vunpack.c.h.b16 %v1278
    %v1441 = vunpack.c.h.b16 %v1279
    %v1442 = vunpack.c.h.b16 %v1280
    %v1443 = vunpack.c.h.b16 %v1281
    %v1444 = vunpack.c.h.b16 %v1282
    %v1445 = vunpack.c.h.b16 %v1283
    %v1446 = vunpack.c.h.b16 %v1284
    %v1447 = vunpack.c.h.b16 %v1285
    %v1448 = vunpack.c.h.b16 %v1286
    %v1449 = vunpack.c.h.b16 %v1287
    %v1450 = vunpack.c.h.b16 %v1288
    %v1451 = vunpack.c.h.b16 %v1289
    %v1452 = vunpack.c.h.b16 %v1290
    %v1453 = vunpack.c.h.b16 %v1291
    %v1454 = vunpack.c.h.b16 %v1292
    %v1455 = vunpack.c.h.b16 %v1293
    %v1456 = vunpack.c.h.b16 %v1294
    %v1457 = vunpack.c.h.b16 %v1295
    %v1458 = vunpack.c.h.b16 %v1296
    %v1459 = vunpack.c.h.b16 %v1297
    %v1460 = vunpack.c.h.b16 %v1298
    %v1461 = vunpack.c.h.b16 %v1299
    %v1462 = vunpack.c.h.b16 %v1300
    %v1463 = vunpack.c.h.b16 %v1301
    %v1464 = vunpack.c.h.b16 %v1302
    %v1465 = vpack.c.b16 %v1358, %v1357
    %v1466 = vpack.c.b16 %v1360, %v1359
    %v1467 = vpack.c.b16 %v1362, %v1361
    %v1468 = vpack.c.b16 %v1364, %v1363
    %v1469 = vpack.c.b16 %v1366, %v1365
    %v1470 = vpack.c.b16 %v1368, %v1367
    %v1471 = vpack.c.b16 %v1370, %v1369
    %v1472 = vpack.c.b16 %v1372, %v1371
    %v1473 = vpack.c.b16 %v1374, %v1373
    %v1474 = vpack.c.b16 %v1376, %v1375
    %v1475 = vpack.c.b16 %v1378, %v1377
    %v1476 = vpack.c.b16 %v1380, %v1379
    %v1477 = vpack.c.b16 %v1382, %v1381
    %v1478 = vpack.c.b16 %v1383, %v1383
    %v1479 = vpack.c.b16 %v1385, %v1384
    %v1480 = vpack.c.b16 %v1387, %v1386
    %v1481 = vpack.c.b16 %v1389, %v1388
    %v1482 = vpack.c.b16 %v1391, %v1390
    %v1483 = vpack.c.b16 %v1393, %v1392
    %v1484 = vpack.c.b16 %v1395, %v1394
    %v1485 = vpack.c.b16 %v1397, %v1396
    %v1486 = vpack.c.b16 %v1399, %v1398
    %v1487 = vpack.c.b16 %v1401, %v1400
    %v1488 = vpack.c.b16 %v1403, %v1402
    %v1489 = vpack.c.b16 %v1405, %v1404
    %v1490 = vpack.c.b16 %v1407, %v1406
    %v1491 = vpack.c.b16 %v1409, %v1408
    %v1492 = vpack.c.b16 %v1410, %v1410
    %v1493 = vpack.c.b16 %v1412, %v1411
    %v1494 = vpack.c.b16 %v1414, %v1413
    %v1495 = vpack.c.b16 %v1416, %v1415
    %v1496 = vpack.c.b16 %v1418, %v1417
    %v1497 = vpack.c.b16 %v1420, %v1419
    %v1498 = vpack.c.b16 %v1422, %v1421
    %v1499 = vpack.c.b16 %v1424, %v1423
    %v1500 = vpack.c.b16 %v1426, %v1425
    %v1501 = vpack.c.b16 %v1428, %v1427
    %v1502 = vpack.c.b16 %v1430, %v1429
    %v1503 = vpack.c.b16 %v1432, %v1431
    %v1504 = vpack.c.b16 %v1434, %v1433
    %v1505 = vpack.c.b16 %v1436, %v1435
    %v1506 = vpack.c.b16 %v1437, %v1437
    %v1507 = vpack.c.b16 %v1439, %v1438
    %v1508 = vpack.c.b16 %v1441, %v1440
    %v1509 = vpack.c.b16 %v1443, %v1442
    %v1510 = vpack.c.b16 %v1445, %v1444
    %v1511 = vpack.c.b16 %v1447, %v1446
    %v1512 = vpack.c.b16 %v1449, %v1448
    %v1513 = vpack.c.b16 %v1451, %v1450
    %v1514 = vpack.c.b16 %v1453, %v1452
    %v1515 = vpack.c.b16 %v1455, %v1454
    %v1516 = vpack.c.b16 %v1457, %v1456
    %v1517 = vpack.c.b16 %v1459, %v1458
    %v1518 = vpack.c.b16 %v1461, %v1460
    %v1519 = vpack.c.b16 %v1463, %v1462
    %v1520 = vpack.c.b16 %v1464, %v1464
    %1577 = vst [vmem:[#allocation5] sm:$0xff] %v1465
    %1578 = vst [vmem:[#allocation5 + $0x8] sm:$0xff] %v1466
    %1579 = vst [vmem:[#allocation5 + $0x10] sm:$0xff] %v1467
    %1580 = vst [vmem:[#allocation5 + $0x18] sm:$0xff] %v1468
    %1581 = vst [vmem:[#allocation5 + $0x20] sm:$0xff] %v1469
    %1582 = vst [vmem:[#allocation5 + $0x28] sm:$0xff] %v1470
    %1583 = vst [vmem:[#allocation5 + $0x30] sm:$0xff] %v1471
    %1584 = vst [vmem:[#allocation5 + $0x38] sm:$0xff] %v1472
    %1585 = vst [vmem:[#allocation5 + $0x40] sm:$0xff] %v1473
    %1586 = vst [vmem:[#allocation5 + $0x48] sm:$0xff] %v1474
    %1587 = vst [vmem:[#allocation5 + $0x50] sm:$0xff] %v1475
    %1588 = vst [vmem:[#allocation5 + $0x58] sm:$0xff] %v1476
    %1589 = vst [vmem:[#allocation5 + $0x60] sm:$0xff] %v1477
    %1590 = vst [vmem:[#allocation5 + $0x68] sm:$0xf] %v1478
    %1591 = vst [vmem:[#allocation5 + $0x6c] sm:$0xff] %v1479
    %1592 = vst [vmem:[#allocation5 + $0x74] sm:$0xff] %v1480
    %1593 = vst [vmem:[#allocation5 + $0x7c] sm:$0xff] %v1481
    %1594 = vst [vmem:[#allocation5 + $0x84] sm:$0xff] %v1482
    %1595 = vst [vmem:[#allocation5 + $0x8c] sm:$0xff] %v1483
    %1596 = vst [vmem:[#allocation5 + $0x94] sm:$0xff] %v1484
    %1597 = vst [vmem:[#allocation5 + $0x9c] sm:$0xff] %v1485
    %1598 = vst [vmem:[#allocation5 + $0xa4] sm:$0xff] %v1486
    %1599 = vst [vmem:[#allocation5 + $0xac] sm:$0xff] %v1487
    %1600 = vst [vmem:[#allocation5 + $0xb4] sm:$0xff] %v1488
    %1601 = vst [vmem:[#allocation5 + $0xbc] sm:$0xff] %v1489
    %1602 = vst [vmem:[#allocation5 + $0xc4] sm:$0xff] %v1490
    %1603 = vst [vmem:[#allocation5 + $0xcc] sm:$0xff] %v1491
    %1604 = vst [vmem:[#allocation5 + $0xd4] sm:$0xf] %v1492
    %1605 = vst [vmem:[#allocation5 + $0xd8] sm:$0xff] %v1493
    %1606 = vst [vmem:[#allocation5 + $0xe0] sm:$0xff] %v1494
    %1607 = vst [vmem:[#allocation5 + $0xe8] sm:$0xff] %v1495
    %1608 = vst [vmem:[#allocation5 + $0xf0] sm:$0xff] %v1496
    %1609 = vst [vmem:[#allocation5 + $0xf8] sm:$0xff] %v1497
    %1610 = vst [vmem:[#allocation5 + $0x100] sm:$0xff] %v1498
    %1611 = vst [vmem:[#allocation5 + $0x108] sm:$0xff] %v1499
    %1612 = vst [vmem:[#allocation5 + $0x110] sm:$0xff] %v1500
    %1613 = vst [vmem:[#allocation5 + $0x118] sm:$0xff] %v1501
    %1614 = vst [vmem:[#allocation5 + $0x120] sm:$0xff] %v1502
    %1615 = vst [vmem:[#allocation5 + $0x128] sm:$0xff] %v1503
    %1616 = vst [vmem:[#allocation5 + $0x130] sm:$0xff] %v1504
    %1617 = vst [vmem:[#allocation5 + $0x138] sm:$0xff] %v1505
    %1618 = vst [vmem:[#allocation5 + $0x140] sm:$0xf] %v1506
    %1619 = vst [vmem:[#allocation5 + $0x144] sm:$0xff] %v1507
    %1620 = vst [vmem:[#allocation5 + $0x14c] sm:$0xff] %v1508
    %1621 = vst [vmem:[#allocation5 + $0x154] sm:$0xff] %v1509
    %1622 = vst [vmem:[#allocation5 + $0x15c] sm:$0xff] %v1510
    %1623 = vst [vmem:[#allocation5 + $0x164] sm:$0xff] %v1511
    %1624 = vst [vmem:[#allocation5 + $0x16c] sm:$0xff] %v1512
    %1625 = vst [vmem:[#allocation5 + $0x174] sm:$0xff] %v1513
    %1626 = vst [vmem:[#allocation5 + $0x17c] sm:$0xff] %v1514
    %1627 = vst [vmem:[#allocation5 + $0x184] sm:$0xff] %v1515
    %1628 = vst [vmem:[#allocation5 + $0x18c] sm:$0xff] %v1516
    %1629 = vst [vmem:[#allocation5 + $0x194] sm:$0xff] %v1517
    %1630 = vst [vmem:[#allocation5 + $0x19c] sm:$0xff] %v1518
    %1631 = vst [vmem:[#allocation5 + $0x1a4] sm:$0xff] %v1519
    %1632 = vst [vmem:[#allocation5 + $0x1ac] sm:$0xf] %v1520
    // Predicated region
    $region18: #{tpu_custom_call.1} parent=1 // pred_check
      _
    $region19: #{tpu_custom_call.1} parent=1 // pred_check_branch
      %1634 = sbr.rel (0) target = $region21
    $region20: #{tpu_custom_call.1} parent=1 // pred_region
      %s1636 = ssub.s32 6912, 6912
      %1637 = vsyncadd [#allocation4], %s1636
      %s1638 = sshll.u32 [#allocation5], 4
      %s1639 = int_to_ptr.vmem [resolvable:$true] %s1638
      %1644 = dma.vmem_to_hbm [thread:$0]  %s1639, 6912, %s3, [#allocation4], 1728, 1728, 108
    $region21: #{tpu_custom_call.1} parent=1 // pred_fallthru
      _
    // Predicated region
    $region22: #{tpu_custom_call.1} parent=1 // pred_check
      _
    $region23: #{tpu_custom_call.1} parent=1 // pred_check_branch
      %1646 = sbr.rel (0) target = $region25
    $region24: #{tpu_custom_call.1} parent=1 // pred_region
      %1647 = dma.done [#allocation4], 6912
    $region25: #{tpu_custom_call.1} parent=1 // pred_fallthru
      _
    %1648 = vsyncpa [#allocation3], 1
    %1649 = vsyncpa [#allocation4], 1

</llo_original>
